<compile_context>
chip_gen: v5e
topology: v5e:2x2
jax: 0.10.0
libtpu: 0.0.40
codegen_flags: <defaults>
</compile_context>

<pallas_src>
import functools

import jax
import jax.numpy as jnp
from jax import lax
from jax.experimental import pallas as pl
from jax.experimental.pallas import tpu as pltpu


# ----------------------------------------------------------------------------
# Pallas kernel: contribution of one temporal tap (kd) of a 3x3x3 conv to one
# output temporal frame, fused with BN scale/shift (+ optional ReLU) epilogue.
# ----------------------------------------------------------------------------
def _make_conv_bn_kernel(Ho, Wo, Cin, Cout, ss, apply_relu):
    M = Ho * Wo
    Hin = (Ho - 1) * ss + 1     # input rows needed per kh tap-row
    Win = (Wo - 1) * ss + 1     # input cols needed per kw tap

    def kernel(x_ref, w_ref, scale_ref, shift_ref, o_ref, acc_ref):
        # x_ref     : (1, 1, Hp, Wp, Cin)   one padded input frame (bf16)
        # w_ref     : (1, 3, 3*Cin, Cout)   kd-slab of folded block-diag weights
        # scale_ref : (1, Cout) f32 folded BN scale
        # shift_ref : (1, Cout) f32 folded BN shift
        # o_ref     : (1, 1, Ho, Wo, Cout)  output frame
        # acc_ref   : (Ho*Wo, Cout) f32 VMEM scratch accumulator
        kd = pl.program_id(2)

        @pl.when(kd == 0)
        def _init():
            acc_ref[...] = jnp.zeros_like(acc_ref)

        for kh in range(3):
            # Row slab for this kh tap, sliced directly from the VMEM ref.
            slab = x_ref[0, 0, pl.ds(kh, Hin), :, :]          # (Hin, Wp, Cin)
            if ss > 1:
                slab = slab[::ss]                             # (Ho, Wp, Cin)
            # Fold the 3 kw taps into the contraction dim (im2col along W).
            taps = []
            for kw in range(3):
                col = slab[:, kw:kw + Win, :]                 # (Ho, Win, Cin)
                if ss > 1:
                    col = col[:, ::ss, :]                     # (Ho, Wo, Cin)
                taps.append(col)
            patch = jnp.concatenate(taps, axis=-1)            # (Ho, Wo, 3*Cin)
            patch = patch.reshape(M, 3 * Cin).astype(jnp.bfloat16)
            # One lane-dense MXU matmul per (kd, kh): K = 3*Cin, N = Cout.
            acc_ref[...] += jnp.dot(patch, w_ref[0, kh],
                                    preferred_element_type=jnp.float32)

        @pl.when(kd == 2)
        def _finalize():
            y = acc_ref[...] * scale_ref[...] + shift_ref[...]   # fused BN (f32)
            if apply_relu:
                y = jnp.maximum(y, 0.0)
            o_ref[0, 0] = y.reshape(Ho, Wo, Cout).astype(o_ref.dtype)

    return kernel


def conv3d_bn(x_ndhwc, w_folded, scale, shift, *, strides, out_dtype, relu):
    """Grouped 3x3x3 conv (pad 1) + folded-BN (+ ReLU).

    x_ndhwc  : (N, T, H, W, Cin) bf16 activations.
    w_folded : (3, 3, 3*Cin, Cout) bf16, block-diagonal over groups with the
               kw tap folded into the contraction dim.
    """
    N, T, H, W, Cin = x_ndhwc.shape
    Cout = w_folded.shape[-1]
    st, ss = strides
    To = (T + 2 - 3) // st + 1
    Ho = (H + 2 - 3) // ss + 1
    Wo = (W + 2 - 3) // ss + 1

    # TODO(synk): padding done by XLA outside the kernel (extra HBM pass).
    xp = jnp.pad(x_ndhwc, ((0, 0), (1, 1), (1, 1), (1, 1), (0, 0)))
    Hp, Wp = H + 2, W + 2

    kernel = _make_conv_bn_kernel(Ho, Wo, Cin, Cout, ss, relu)

    grid_spec = pltpu.PrefetchScalarGridSpec(
        num_scalar_prefetch=0,
        grid=(N, To, 3),                      # batch, output frame, temporal tap
        in_specs=[
            # One padded input frame; temporal stride handled by the index_map.
            pl.BlockSpec((1, 1, Hp, Wp, Cin),
                         lambda n, t, kd: (n, t * st + kd, 0, 0, 0)),
            # kd-slab of folded weights.
            pl.BlockSpec((1, 3, 3 * Cin, Cout),
                         lambda n, t, kd: (kd, 0, 0, 0)),
            pl.BlockSpec((1, Cout), lambda n, t, kd: (0, 0)),
            pl.BlockSpec((1, Cout), lambda n, t, kd: (0, 0)),
        ],
        out_specs=pl.BlockSpec((1, 1, Ho, Wo, Cout),
                               lambda n, t, kd: (n, t, 0, 0, 0)),
        scratch_shapes=[pltpu.VMEM((Ho * Wo, Cout), jnp.float32)],
    )

    return pl.pallas_call(
        kernel,
        out_shape=jax.ShapeDtypeStruct((N, To, Ho, Wo, Cout), out_dtype),
        grid_spec=grid_spec,
        compiler_params=pltpu.CompilerParams(
            dimension_semantics=("parallel", "parallel", "arbitrary")),
    )(xp, w_folded, scale, shift)


# ----------------------------------------------------------------------------
# Parameter construction
# ----------------------------------------------------------------------------
def fold_bn(gamma, beta, running_mean, running_var, eps):
    scale = gamma / jnp.sqrt(running_var + eps)
    shift = beta - running_mean * scale
    return scale[None, :], shift[None, :]            # (1, C) f32


def fold_grouped_weight(w, groups):
    """(3,3,3,cin_g,Cout) grouped -> (3,3,3*Cin,Cout) bf16 block-diag, kw in K."""
    kT, kH, kW, cin_g, Cout = w.shape
    cout_g = Cout // groups
    Cin = cin_g * groups
    wbd = jnp.zeros((kT, kH, kW, Cin, Cout), w.dtype)
    for g in range(groups):
        wbd = wbd.at[:, :, :, g * cin_g:(g + 1) * cin_g,
                     g * cout_g:(g + 1) * cout_g].set(
                         w[:, :, :, :, g * cout_g:(g + 1) * cout_g])
    # Flatten (kw, ci) -> K index kw*Cin + ci (matches in-kernel kw concat order).
    return wbd.reshape(kT, kH, kW * Cin, Cout).astype(jnp.bfloat16)


def init_basic_transformation(key, dim_in, dim_out, groups, bn_eps=1e-5):
    ks = jax.random.split(key, 10)
    f32 = jnp.float32
    # Grouped conv weights (kT, kH, kW, Cin_g, Cout), Cout group-major — same
    # channel-grouping convention as PyTorch's (Cout, Cin_g, kT, kH, kW).
    w1 = jax.random.normal(ks[0], (3, 3, 3, dim_in // groups, dim_out), f32) * 0.1
    w2 = jax.random.normal(ks[1], (3, 3, 3, dim_out // groups, dim_out), f32) * 0.1
    # BN params / running stats (deterministic, synthetic).
    g1 = jax.random.uniform(ks[2], (dim_out,), f32, 0.5, 1.5)
    b1 = jax.random.normal(ks[3], (dim_out,), f32) * 0.1
    m1 = jax.random.normal(ks[4], (dim_out,), f32) * 0.1
    v1 = jax.random.uniform(ks[5], (dim_out,), f32, 0.5, 1.5)
    g2 = jax.random.uniform(ks[6], (dim_out,), f32, 0.5, 1.5)
    b2 = jax.random.normal(ks[7], (dim_out,), f32) * 0.1
    m2 = jax.random.normal(ks[8], (dim_out,), f32) * 0.1
    v2 = jax.random.uniform(ks[9], (dim_out,), f32, 0.5, 1.5)
    s1, sh1 = fold_bn(g1, b1, m1, v1, bn_eps)
    s2, sh2 = fold_bn(g2, b2, m2, v2, bn_eps)
    return dict(
        # f32 grouped weights (reference only)
        w1=w1, w2=w2,
        # bf16 block-diagonal / kw-folded weights (kernel)
        w1_f=fold_grouped_weight(w1, groups),
        w2_f=fold_grouped_weight(w2, groups),
        scale1=s1, shift1=sh1, scale2=s2, shift2=sh2)


# ----------------------------------------------------------------------------
# Forward pass (NCDHW in / NCDHW out, matching the PyTorch module)
# ----------------------------------------------------------------------------
@functools.partial(jax.jit, static_argnames=("temporal_stride",
                                             "spatial_stride", "groups"))
def basic_transformation_forward(params, x_ncdhw, *, temporal_stride,
                                 spatial_stride, groups):
    del groups  # grouping is already folded into the block-diagonal weights
    x = jnp.transpose(x_ncdhw, (0, 2, 3, 4, 1)).astype(jnp.bfloat16)  # -> NDHWC
    y = conv3d_bn(x, params["w1_f"], params["scale1"], params["shift1"],
                  strides=(temporal_stride, spatial_stride),
                  out_dtype=jnp.bfloat16, relu=True)
    y = conv3d_bn(y, params["w2_f"], params["scale2"], params["shift2"],
                  strides=(1, 1), out_dtype=jnp.float32, relu=False)
    return jnp.transpose(y, (0, 4, 1, 2, 3))                          # -> NCDHW


# ----------------------------------------------------------------------------
# Pure-JAX f32 reference (lax.conv_general_dilated) for verification
# ----------------------------------------------------------------------------
def reference_forward(params, x_ncdhw, *, temporal_stride, spatial_stride,
                      groups):
    x = jnp.transpose(x_ncdhw, (0, 2, 3, 4, 1))
    dn = ("NDHWC", "DHWIO", "NDHWC")
    pad = ((1, 1), (1, 1), (1, 1))
    y = lax.conv_general_dilated(
        x, params["w1"], (temporal_stride, spatial_stride, spatial_stride),
        pad, dimension_numbers=dn, feature_group_count=groups)
    y = jnp.maximum(y * params["scale1"] + params["shift1"], 0.0)
    y = lax.conv_general_dilated(
        y, params["w2"], (1, 1, 1), pad, dimension_numbers=dn,
        feature_group_count=groups)
    y = y * params["scale2"] + params["shift2"]
    return jnp.transpose(y, (0, 4, 1, 2, 3))


if __name__ == "__main__":
    # Small config: N=2, dim_in=8, dim_out=8, T=4, H=W=8, groups=2,
    # temporal_stride=2, spatial_stride=1.
    N, dim_in, dim_out = 2, 8, 8
    T, H, W = 4, 8, 8
    groups = 2
    temporal_stride, spatial_stride = 2, 1

    key = jax.random.PRNGKey(0)
    k_params, k_x = jax.random.split(key)
    params = init_basic_transformation(k_params, dim_in, dim_out, groups)
    x = jax.random.normal(k_x, (N, dim_in, T, H, W), jnp.float32)   # NCDHW

    out = basic_transformation_forward(
        params, x, temporal_stride=temporal_stride,
        spatial_stride=spatial_stride, groups=groups)
    out = jax.block_until_ready(out)

    ref = reference_forward(
        params, x, temporal_stride=temporal_stride,
        spatial_stride=spatial_stride, groups=groups)
    ref = jax.block_until_ready(ref)

    assert out.shape == ref.shape, (out.shape, ref.shape)
    max_err = float(jnp.max(jnp.abs(out - ref)))
    # Kernel runs the matmuls in bf16 (f32 accumulation); reference is f32.
    assert jnp.allclose(out, ref, rtol=5e-2, atol=5e-2), max_err
    print("KERNEL_OK")
</pallas_src>

<mosaic_0001>
module attributes {stable_mosaic.version = 11 : i64} {
  func.func @kernel(%arg0: i32, %arg1: i32, %arg2: i32, %arg3: memref<1x1x10x10x8xbf16, #tpu.memory_space<vmem>>, %arg4: memref<1x3x24x8xbf16, #tpu.memory_space<vmem>>, %arg5: memref<1x8xf32, #tpu.memory_space<vmem>>, %arg6: memref<1x8xf32, #tpu.memory_space<vmem>>, %arg7: memref<1x1x8x8x8xbf16, #tpu.memory_space<vmem>>, %arg8: memref<64x8xf32, #tpu.memory_space<vmem>>) attributes {dimension_semantics = [#tpu.dimension_semantics<parallel>, #tpu.dimension_semantics<parallel>, #tpu.dimension_semantics<arbitrary>], iteration_bounds = array<i64: 2, 2, 3>, scalar_prefetch = 0 : i64, scratch_operands = 1 : i64, tpu.core_type = #tpu.core_type<tc>, window_params = [{transform_indices = @transform_0, window_bounds = array<i64: 1, 1, 10, 10, 8>}, {transform_indices = @transform_1, window_bounds = array<i64: 1, 3, 24, 8>}, {pipeline_mode = #tpu.pipeline_mode<synchronous>, transform_indices = @transform_2, window_bounds = array<i64: 1, 8>}, {pipeline_mode = #tpu.pipeline_mode<synchronous>, transform_indices = @transform_3, window_bounds = array<i64: 1, 8>}, {transform_indices = @transform_4, window_bounds = array<i64: 1, 1, 8, 8, 8>}]} {
    %c0_i32 = arith.constant 0 : i32
    %0 = arith.cmpi eq, %arg2, %c0_i32 : i32
    %1 = arith.extui %0 : i1 to i32
    %c0_i32_0 = arith.constant 0 : i32
    %2 = arith.cmpi ne, %1, %c0_i32_0 : i32
    scf.if %2 {
      %cst_40 = arith.constant 0.000000e+00 : f32
      %45 = vector.broadcast %cst_40 : f32 to vector<64x8xf32>
      %c0_41 = arith.constant 0 : index
      %c0_42 = arith.constant 0 : index
      %46 = vector.load %arg8[%c0_41, %c0_42] : memref<64x8xf32, #tpu.memory_space<vmem>>, vector<64x8xf32>
      tpu.vector_store %arg8[%c0_41, %c0_42], %45 {strides = array<i32>} : memref<64x8xf32, #tpu.memory_space<vmem>>, vector<64x8xf32>,
    } else {
    }
    %c0 = arith.constant 0 : index
    %c0_1 = arith.constant 0 : index
    %c0_2 = arith.constant 0 : index
    %c0_3 = arith.constant 0 : index
    %c0_4 = arith.constant 0 : index
    %3 = vector.load %arg3[%c0, %c0_1, %c0_2, %c0_3, %c0_4] : memref<1x1x10x10x8xbf16, #tpu.memory_space<vmem>>, vector<1x1x8x10x8xbf16>
    %4 = vector.shape_cast %3 : vector<1x1x8x10x8xbf16> to vector<8x10x8xbf16>
    %5 = vector.extract_strided_slice %4 {offsets = [0, 0, 0], sizes = [8, 8, 8], strides = [1, 1, 1]} : vector<8x10x8xbf16> to vector<8x8x8xbf16>
    %6 = vector.extract_strided_slice %4 {offsets = [0, 1, 0], sizes = [8, 8, 8], strides = [1, 1, 1]} : vector<8x10x8xbf16> to vector<8x8x8xbf16>
    %7 = vector.extract_strided_slice %4 {offsets = [0, 2, 0], sizes = [8, 8, 8], strides = [1, 1, 1]} : vector<8x10x8xbf16> to vector<8x8x8xbf16>
    %8 = tpu.concatenate %5, %6, %7 in 2 : vector<8x8x8xbf16>, vector<8x8x8xbf16>, vector<8x8x8xbf16> -> vector<8x8x24xbf16>
    %9 = vector.shape_cast %8 : vector<8x8x24xbf16> to vector<64x24xbf16>
    %c0_5 = arith.constant 0 : index
    %c0_6 = arith.constant 0 : index
    %10 = vector.load %arg8[%c0_5, %c0_6] : memref<64x8xf32, #tpu.memory_space<vmem>>, vector<64x8xf32>
    %c0_7 = arith.constant 0 : index
    %c0_8 = arith.constant 0 : index
    %c0_9 = arith.constant 0 : index
    %c0_10 = arith.constant 0 : index
    %11 = vector.load %arg4[%c0_7, %c0_8, %c0_9, %c0_10] : memref<1x3x24x8xbf16, #tpu.memory_space<vmem>>, vector<1x1x24x8xbf16>
    %12 = vector.shape_cast %11 : vector<1x1x24x8xbf16> to vector<24x8xbf16>
    %cst = arith.constant dense<0.000000e+00> : vector<64x8xf32>
    %13 = tpu.matmul %9, %12, %cst {dimension_numbers = #tpu.dot_dimension_numbers<[1], [0], [0], [1], [0, 0, 1, 1], [], []>} : vector<64x24xbf16>, vector<24x8xbf16>, vector<64x8xf32> -> vector<64x8xf32>
    %14 = arith.addf %10, %13 : vector<64x8xf32>
    %c0_11 = arith.constant 0 : index
    %c0_12 = arith.constant 0 : index
    %15 = vector.load %arg8[%c0_11, %c0_12] : memref<64x8xf32, #tpu.memory_space<vmem>>, vector<64x8xf32>
    tpu.vector_store %arg8[%c0_11, %c0_12], %14 {strides = array<i32>} : memref<64x8xf32, #tpu.memory_space<vmem>>, vector<64x8xf32>,
    %c0_13 = arith.constant 0 : index
    %c0_14 = arith.constant 0 : index
    %c1 = arith.constant 1 : index
    %c0_15 = arith.constant 0 : index
    %c0_16 = arith.constant 0 : index
    %16 = vector.load %arg3[%c0_13, %c0_14, %c1, %c0_15, %c0_16] : memref<1x1x10x10x8xbf16, #tpu.memory_space<vmem>>, vector<1x1x8x10x8xbf16>
    %17 = vector.shape_cast %16 : vector<1x1x8x10x8xbf16> to vector<8x10x8xbf16>
    %18 = vector.extract_strided_slice %17 {offsets = [0, 0, 0], sizes = [8, 8, 8], strides = [1, 1, 1]} : vector<8x10x8xbf16> to vector<8x8x8xbf16>
    %19 = vector.extract_strided_slice %17 {offsets = [0, 1, 0], sizes = [8, 8, 8], strides = [1, 1, 1]} : vector<8x10x8xbf16> to vector<8x8x8xbf16>
    %20 = vector.extract_strided_slice %17 {offsets = [0, 2, 0], sizes = [8, 8, 8], strides = [1, 1, 1]} : vector<8x10x8xbf16> to vector<8x8x8xbf16>
    %21 = tpu.concatenate %18, %19, %20 in 2 : vector<8x8x8xbf16>, vector<8x8x8xbf16>, vector<8x8x8xbf16> -> vector<8x8x24xbf16>
    %22 = vector.shape_cast %21 : vector<8x8x24xbf16> to vector<64x24xbf16>
    %c0_17 = arith.constant 0 : index
    %c0_18 = arith.constant 0 : index
    %23 = vector.load %arg8[%c0_17, %c0_18] : memref<64x8xf32, #tpu.memory_space<vmem>>, vector<64x8xf32>
    %c0_19 = arith.constant 0 : index
    %c1_20 = arith.constant 1 : index
    %c0_21 = arith.constant 0 : index
    %c0_22 = arith.constant 0 : index
    %24 = vector.load %arg4[%c0_19, %c1_20, %c0_21, %c0_22] : memref<1x3x24x8xbf16, #tpu.memory_space<vmem>>, vector<1x1x24x8xbf16>
    %25 = vector.shape_cast %24 : vector<1x1x24x8xbf16> to vector<24x8xbf16>
    %cst_23 = arith.constant dense<0.000000e+00> : vector<64x8xf32>
    %26 = tpu.matmul %22, %25, %cst_23 {dimension_numbers = #tpu.dot_dimension_numbers<[1], [0], [0], [1], [0, 0, 1, 1], [], []>} : vector<64x24xbf16>, vector<24x8xbf16>, vector<64x8xf32> -> vector<64x8xf32>
    %27 = arith.addf %23, %26 : vector<64x8xf32>
    %c0_24 = arith.constant 0 : index
    %c0_25 = arith.constant 0 : index
    %28 = vector.load %arg8[%c0_24, %c0_25] : memref<64x8xf32, #tpu.memory_space<vmem>>, vector<64x8xf32>
    tpu.vector_store %arg8[%c0_24, %c0_25], %27 {strides = array<i32>} : memref<64x8xf32, #tpu.memory_space<vmem>>, vector<64x8xf32>,
    %c0_26 = arith.constant 0 : index
    %c0_27 = arith.constant 0 : index
    %c2 = arith.constant 2 : index
    %c0_28 = arith.constant 0 : index
    %c0_29 = arith.constant 0 : index
    %29 = vector.load %arg3[%c0_26, %c0_27, %c2, %c0_28, %c0_29] : memref<1x1x10x10x8xbf16, #tpu.memory_space<vmem>>, vector<1x1x8x10x8xbf16>
    %30 = vector.shape_cast %29 : vector<1x1x8x10x8xbf16> to vector<8x10x8xbf16>
    %31 = vector.extract_strided_slice %30 {offsets = [0, 0, 0], sizes = [8, 8, 8], strides = [1, 1, 1]} : vector<8x10x8xbf16> to vector<8x8x8xbf16>
    %32 = vector.extract_strided_slice %30 {offsets = [0, 1, 0], sizes = [8, 8, 8], strides = [1, 1, 1]} : vector<8x10x8xbf16> to vector<8x8x8xbf16>
    %33 = vector.extract_strided_slice %30 {offsets = [0, 2, 0], sizes = [8, 8, 8], strides = [1, 1, 1]} : vector<8x10x8xbf16> to vector<8x8x8xbf16>
    %34 = tpu.concatenate %31, %32, %33 in 2 : vector<8x8x8xbf16>, vector<8x8x8xbf16>, vector<8x8x8xbf16> -> vector<8x8x24xbf16>
    %35 = vector.shape_cast %34 : vector<8x8x24xbf16> to vector<64x24xbf16>
    %c0_30 = arith.constant 0 : index
    %c0_31 = arith.constant 0 : index
    %36 = vector.load %arg8[%c0_30, %c0_31] : memref<64x8xf32, #tpu.memory_space<vmem>>, vector<64x8xf32>
    %c0_32 = arith.constant 0 : index
    %c2_33 = arith.constant 2 : index
    %c0_34 = arith.constant 0 : index
    %c0_35 = arith.constant 0 : index
    %37 = vector.load %arg4[%c0_32, %c2_33, %c0_34, %c0_35] : memref<1x3x24x8xbf16, #tpu.memory_space<vmem>>, vector<1x1x24x8xbf16>
    %38 = vector.shape_cast %37 : vector<1x1x24x8xbf16> to vector<24x8xbf16>
    %cst_36 = arith.constant dense<0.000000e+00> : vector<64x8xf32>
    %39 = tpu.matmul %35, %38, %cst_36 {dimension_numbers = #tpu.dot_dimension_numbers<[1], [0], [0], [1], [0, 0, 1, 1], [], []>} : vector<64x24xbf16>, vector<24x8xbf16>, vector<64x8xf32> -> vector<64x8xf32>
    %40 = arith.addf %36, %39 : vector<64x8xf32>
    %c0_37 = arith.constant 0 : index
    %c0_38 = arith.constant 0 : index
    %41 = vector.load %arg8[%c0_37, %c0_38] : memref<64x8xf32, #tpu.memory_space<vmem>>, vector<64x8xf32>
    tpu.vector_store %arg8[%c0_37, %c0_38], %40 {strides = array<i32>} : memref<64x8xf32, #tpu.memory_space<vmem>>, vector<64x8xf32>,
    %c2_i32 = arith.constant 2 : i32
    %42 = arith.cmpi eq, %arg2, %c2_i32 : i32
    %43 = arith.extui %42 : i1 to i32
    %c0_i32_39 = arith.constant 0 : i32
    %44 = arith.cmpi ne, %43, %c0_i32_39 : i32
    scf.if %44 {
      %c0_40 = arith.constant 0 : index
      %c0_41 = arith.constant 0 : index
      %45 = vector.load %arg8[%c0_40, %c0_41] : memref<64x8xf32, #tpu.memory_space<vmem>>, vector<64x8xf32>
      %c0_42 = arith.constant 0 : index
      %c0_43 = arith.constant 0 : index
      %46 = vector.load %arg5[%c0_42, %c0_43] : memref<1x8xf32, #tpu.memory_space<vmem>>, vector<1x8xf32>
      %47 = vector.broadcast %46 : vector<1x8xf32> to vector<64x8xf32>
      %48 = arith.mulf %45, %47 : vector<64x8xf32>
      %c0_44 = arith.constant 0 : index
      %c0_45 = arith.constant 0 : index
      %49 = vector.load %arg6[%c0_44, %c0_45] : memref<1x8xf32, #tpu.memory_space<vmem>>, vector<1x8xf32>
      %50 = vector.broadcast %49 : vector<1x8xf32> to vector<64x8xf32>
      %51 = arith.addf %48, %50 : vector<64x8xf32>
      %cst_46 = arith.constant 0.000000e+00 : f32
      %52 = vector.broadcast %cst_46 : f32 to vector<64x8xf32>
      %53 = arith.maximumf %51, %52 : vector<64x8xf32>
      %54 = vector.shape_cast %53 : vector<64x8xf32> to vector<8x8x8xf32>
      %55 = arith.truncf %54 : vector<8x8x8xf32> to vector<8x8x8xbf16>
      %c0_47 = arith.constant 0 : index
      %c0_48 = arith.constant 0 : index
      %c0_49 = arith.constant 0 : index
      %c0_50 = arith.constant 0 : index
      %c0_51 = arith.constant 0 : index
      %56 = vector.load %arg7[%c0_47, %c0_48, %c0_49, %c0_50, %c0_51] : memref<1x1x8x8x8xbf16, #tpu.memory_space<vmem>>, vector<1x1x8x8x8xbf16>
      %57 = vector.shape_cast %56 : vector<1x1x8x8x8xbf16> to vector<8x8x8xbf16>
      %58 = vector.shape_cast %55 : vector<8x8x8xbf16> to vector<1x1x8x8x8xbf16>
      tpu.vector_store %arg7[%c0_47, %c0_48, %c0_49, %c0_50, %c0_51], %58 {strides = array<i32>} : memref<1x1x8x8x8xbf16, #tpu.memory_space<vmem>>, vector<1x1x8x8x8xbf16>,
    } else {
    }
    return
  }
  func.func @transform_0(%arg0: i32, %arg1: i32, %arg2: i32) -> (i32, i32, i32, i32, i32) {
    %c2_i32 = arith.constant 2 : i32
    %0 = arith.muli %arg1, %c2_i32 : i32
    %1 = arith.addi %0, %arg2 : i32
    %c0_i32 = arith.constant 0 : i32
    %c0_i32_0 = arith.constant 0 : i32
    %c0_i32_1 = arith.constant 0 : i32
    %c0_i32_2 = arith.constant 0 : i32
    return %arg0, %1, %c0_i32, %c0_i32_0, %c0_i32_1 : i32, i32, i32, i32, i32
  }
  func.func @transform_1(%arg0: i32, %arg1: i32, %arg2: i32) -> (i32, i32, i32, i32) {
    %c0_i32 = arith.constant 0 : i32
    %c0_i32_0 = arith.constant 0 : i32
    %c0_i32_1 = arith.constant 0 : i32
    %c0_i32_2 = arith.constant 0 : i32
    return %arg2, %c0_i32, %c0_i32_0, %c0_i32_1 : i32, i32, i32, i32
  }
  func.func @transform_2(%arg0: i32, %arg1: i32, %arg2: i32) -> (i32, i32) {
    %c0_i32 = arith.constant 0 : i32
    %c0_i32_0 = arith.constant 0 : i32
    %c0_i32_1 = arith.constant 0 : i32
    return %c0_i32, %c0_i32_0 : i32, i32
  }
  func.func @transform_3(%arg0: i32, %arg1: i32, %arg2: i32) -> (i32, i32) {
    %c0_i32 = arith.constant 0 : i32
    %c0_i32_0 = arith.constant 0 : i32
    %c0_i32_1 = arith.constant 0 : i32
    return %c0_i32, %c0_i32_0 : i32, i32
  }
  func.func @transform_4(%arg0: i32, %arg1: i32, %arg2: i32) -> (i32, i32, i32, i32, i32) {
    %c0_i32 = arith.constant 0 : i32
    %c0_i32_0 = arith.constant 0 : i32
    %c0_i32_1 = arith.constant 0 : i32
    %c0_i32_2 = arith.constant 0 : i32
    return %arg0, %arg1, %c0_i32, %c0_i32_0, %c0_i32_1 : i32, i32, i32, i32, i32
  }
}

module attributes {stable_mosaic.version = 11 : i64} {
  func.func @kernel(%arg0: i32, %arg1: i32, %arg2: i32, %arg3: memref<1x1x10x10x8xbf16, #tpu.memory_space<vmem>>, %arg4: memref<1x3x24x8xbf16, #tpu.memory_space<vmem>>, %arg5: memref<1x8xf32, #tpu.memory_space<vmem>>, %arg6: memref<1x8xf32, #tpu.memory_space<vmem>>, %arg7: memref<1x1x8x8x8xf32, #tpu.memory_space<vmem>>, %arg8: memref<64x8xf32, #tpu.memory_space<vmem>>) attributes {dimension_semantics = [#tpu.dimension_semantics<parallel>, #tpu.dimension_semantics<parallel>, #tpu.dimension_semantics<arbitrary>], iteration_bounds = array<i64: 2, 2, 3>, scalar_prefetch = 0 : i64, scratch_operands = 1 : i64, tpu.core_type = #tpu.core_type<tc>, window_params = [{transform_indices = @transform_0, window_bounds = array<i64: 1, 1, 10, 10, 8>}, {transform_indices = @transform_1, window_bounds = array<i64: 1, 3, 24, 8>}, {pipeline_mode = #tpu.pipeline_mode<synchronous>, transform_indices = @transform_2, window_bounds = array<i64: 1, 8>}, {pipeline_mode = #tpu.pipeline_mode<synchronous>, transform_indices = @transform_3, window_bounds = array<i64: 1, 8>}, {transform_indices = @transform_4, window_bounds = array<i64: 1, 1, 8, 8, 8>}]} {
    %c0_i32 = arith.constant 0 : i32
    %0 = arith.cmpi eq, %arg2, %c0_i32 : i32
    %1 = arith.extui %0 : i1 to i32
    %c0_i32_0 = arith.constant 0 : i32
    %2 = arith.cmpi ne, %1, %c0_i32_0 : i32
    scf.if %2 {
      %cst_40 = arith.constant 0.000000e+00 : f32
      %45 = vector.broadcast %cst_40 : f32 to vector<64x8xf32>
      %c0_41 = arith.constant 0 : index
      %c0_42 = arith.constant 0 : index
      %46 = vector.load %arg8[%c0_41, %c0_42] : memref<64x8xf32, #tpu.memory_space<vmem>>, vector<64x8xf32>
      tpu.vector_store %arg8[%c0_41, %c0_42], %45 {strides = array<i32>} : memref<64x8xf32, #tpu.memory_space<vmem>>, vector<64x8xf32>,
    } else {
    }
    %c0 = arith.constant 0 : index
    %c0_1 = arith.constant 0 : index
    %c0_2 = arith.constant 0 : index
    %c0_3 = arith.constant 0 : index
    %c0_4 = arith.constant 0 : index
    %3 = vector.load %arg3[%c0, %c0_1, %c0_2, %c0_3, %c0_4] : memref<1x1x10x10x8xbf16, #tpu.memory_space<vmem>>, vector<1x1x8x10x8xbf16>
    %4 = vector.shape_cast %3 : vector<1x1x8x10x8xbf16> to vector<8x10x8xbf16>
    %5 = vector.extract_strided_slice %4 {offsets = [0, 0, 0], sizes = [8, 8, 8], strides = [1, 1, 1]} : vector<8x10x8xbf16> to vector<8x8x8xbf16>
    %6 = vector.extract_strided_slice %4 {offsets = [0, 1, 0], sizes = [8, 8, 8], strides = [1, 1, 1]} : vector<8x10x8xbf16> to vector<8x8x8xbf16>
    %7 = vector.extract_strided_slice %4 {offsets = [0, 2, 0], sizes = [8, 8, 8], strides = [1, 1, 1]} : vector<8x10x8xbf16> to vector<8x8x8xbf16>
    %8 = tpu.concatenate %5, %6, %7 in 2 : vector<8x8x8xbf16>, vector<8x8x8xbf16>, vector<8x8x8xbf16> -> vector<8x8x24xbf16>
    %9 = vector.shape_cast %8 : vector<8x8x24xbf16> to vector<64x24xbf16>
    %c0_5 = arith.constant 0 : index
    %c0_6 = arith.constant 0 : index
    %10 = vector.load %arg8[%c0_5, %c0_6] : memref<64x8xf32, #tpu.memory_space<vmem>>, vector<64x8xf32>
    %c0_7 = arith.constant 0 : index
    %c0_8 = arith.constant 0 : index
    %c0_9 = arith.constant 0 : index
    %c0_10 = arith.constant 0 : index
    %11 = vector.load %arg4[%c0_7, %c0_8, %c0_9, %c0_10] : memref<1x3x24x8xbf16, #tpu.memory_space<vmem>>, vector<1x1x24x8xbf16>
    %12 = vector.shape_cast %11 : vector<1x1x24x8xbf16> to vector<24x8xbf16>
    %cst = arith.constant dense<0.000000e+00> : vector<64x8xf32>
    %13 = tpu.matmul %9, %12, %cst {dimension_numbers = #tpu.dot_dimension_numbers<[1], [0], [0], [1], [0, 0, 1, 1], [], []>} : vector<64x24xbf16>, vector<24x8xbf16>, vector<64x8xf32> -> vector<64x8xf32>
    %14 = arith.addf %10, %13 : vector<64x8xf32>
    %c0_11 = arith.constant 0 : index
    %c0_12 = arith.constant 0 : index
    %15 = vector.load %arg8[%c0_11, %c0_12] : memref<64x8xf32, #tpu.memory_space<vmem>>, vector<64x8xf32>
    tpu.vector_store %arg8[%c0_11, %c0_12], %14 {strides = array<i32>} : memref<64x8xf32, #tpu.memory_space<vmem>>, vector<64x8xf32>,
    %c0_13 = arith.constant 0 : index
    %c0_14 = arith.constant 0 : index
    %c1 = arith.constant 1 : index
    %c0_15 = arith.constant 0 : index
    %c0_16 = arith.constant 0 : index
    %16 = vector.load %arg3[%c0_13, %c0_14, %c1, %c0_15, %c0_16] : memref<1x1x10x10x8xbf16, #tpu.memory_space<vmem>>, vector<1x1x8x10x8xbf16>
    %17 = vector.shape_cast %16 : vector<1x1x8x10x8xbf16> to vector<8x10x8xbf16>
    %18 = vector.extract_strided_slice %17 {offsets = [0, 0, 0], sizes = [8, 8, 8], strides = [1, 1, 1]} : vector<8x10x8xbf16> to vector<8x8x8xbf16>
    %19 = vector.extract_strided_slice %17 {offsets = [0, 1, 0], sizes = [8, 8, 8], strides = [1, 1, 1]} : vector<8x10x8xbf16> to vector<8x8x8xbf16>
    %20 = vector.extract_strided_slice %17 {offsets = [0, 2, 0], sizes = [8, 8, 8], strides = [1, 1, 1]} : vector<8x10x8xbf16> to vector<8x8x8xbf16>
    %21 = tpu.concatenate %18, %19, %20 in 2 : vector<8x8x8xbf16>, vector<8x8x8xbf16>, vector<8x8x8xbf16> -> vector<8x8x24xbf16>
    %22 = vector.shape_cast %21 : vector<8x8x24xbf16> to vector<64x24xbf16>
    %c0_17 = arith.constant 0 : index
    %c0_18 = arith.constant 0 : index
    %23 = vector.load %arg8[%c0_17, %c0_18] : memref<64x8xf32, #tpu.memory_space<vmem>>, vector<64x8xf32>
    %c0_19 = arith.constant 0 : index
    %c1_20 = arith.constant 1 : index
    %c0_21 = arith.constant 0 : index
    %c0_22 = arith.constant 0 : index
    %24 = vector.load %arg4[%c0_19, %c1_20, %c0_21, %c0_22] : memref<1x3x24x8xbf16, #tpu.memory_space<vmem>>, vector<1x1x24x8xbf16>
    %25 = vector.shape_cast %24 : vector<1x1x24x8xbf16> to vector<24x8xbf16>
    %cst_23 = arith.constant dense<0.000000e+00> : vector<64x8xf32>
    %26 = tpu.matmul %22, %25, %cst_23 {dimension_numbers = #tpu.dot_dimension_numbers<[1], [0], [0], [1], [0, 0, 1, 1], [], []>} : vector<64x24xbf16>, vector<24x8xbf16>, vector<64x8xf32> -> vector<64x8xf32>
    %27 = arith.addf %23, %26 : vector<64x8xf32>
    %c0_24 = arith.constant 0 : index
    %c0_25 = arith.constant 0 : index
    %28 = vector.load %arg8[%c0_24, %c0_25] : memref<64x8xf32, #tpu.memory_space<vmem>>, vector<64x8xf32>
    tpu.vector_store %arg8[%c0_24, %c0_25], %27 {strides = array<i32>} : memref<64x8xf32, #tpu.memory_space<vmem>>, vector<64x8xf32>,
    %c0_26 = arith.constant 0 : index
    %c0_27 = arith.constant 0 : index
    %c2 = arith.constant 2 : index
    %c0_28 = arith.constant 0 : index
    %c0_29 = arith.constant 0 : index
    %29 = vector.load %arg3[%c0_26, %c0_27, %c2, %c0_28, %c0_29] : memref<1x1x10x10x8xbf16, #tpu.memory_space<vmem>>, vector<1x1x8x10x8xbf16>
    %30 = vector.shape_cast %29 : vector<1x1x8x10x8xbf16> to vector<8x10x8xbf16>
    %31 = vector.extract_strided_slice %30 {offsets = [0, 0, 0], sizes = [8, 8, 8], strides = [1, 1, 1]} : vector<8x10x8xbf16> to vector<8x8x8xbf16>
    %32 = vector.extract_strided_slice %30 {offsets = [0, 1, 0], sizes = [8, 8, 8], strides = [1, 1, 1]} : vector<8x10x8xbf16> to vector<8x8x8xbf16>
    %33 = vector.extract_strided_slice %30 {offsets = [0, 2, 0], sizes = [8, 8, 8], strides = [1, 1, 1]} : vector<8x10x8xbf16> to vector<8x8x8xbf16>
    %34 = tpu.concatenate %31, %32, %33 in 2 : vector<8x8x8xbf16>, vector<8x8x8xbf16>, vector<8x8x8xbf16> -> vector<8x8x24xbf16>
    %35 = vector.shape_cast %34 : vector<8x8x24xbf16> to vector<64x24xbf16>
    %c0_30 = arith.constant 0 : index
    %c0_31 = arith.constant 0 : index
    %36 = vector.load %arg8[%c0_30, %c0_31] : memref<64x8xf32, #tpu.memory_space<vmem>>, vector<64x8xf32>
    %c0_32 = arith.constant 0 : index
    %c2_33 = arith.constant 2 : index
    %c0_34 = arith.constant 0 : index
    %c0_35 = arith.constant 0 : index
    %37 = vector.load %arg4[%c0_32, %c2_33, %c0_34, %c0_35] : memref<1x3x24x8xbf16, #tpu.memory_space<vmem>>, vector<1x1x24x8xbf16>
    %38 = vector.shape_cast %37 : vector<1x1x24x8xbf16> to vector<24x8xbf16>
    %cst_36 = arith.constant dense<0.000000e+00> : vector<64x8xf32>
    %39 = tpu.matmul %35, %38, %cst_36 {dimension_numbers = #tpu.dot_dimension_numbers<[1], [0], [0], [1], [0, 0, 1, 1], [], []>} : vector<64x24xbf16>, vector<24x8xbf16>, vector<64x8xf32> -> vector<64x8xf32>
    %40 = arith.addf %36, %39 : vector<64x8xf32>
    %c0_37 = arith.constant 0 : index
    %c0_38 = arith.constant 0 : index
    %41 = vector.load %arg8[%c0_37, %c0_38] : memref<64x8xf32, #tpu.memory_space<vmem>>, vector<64x8xf32>
    tpu.vector_store %arg8[%c0_37, %c0_38], %40 {strides = array<i32>} : memref<64x8xf32, #tpu.memory_space<vmem>>, vector<64x8xf32>,
    %c2_i32 = arith.constant 2 : i32
    %42 = arith.cmpi eq, %arg2, %c2_i32 : i32
    %43 = arith.extui %42 : i1 to i32
    %c0_i32_39 = arith.constant 0 : i32
    %44 = arith.cmpi ne, %43, %c0_i32_39 : i32
    scf.if %44 {
      %c0_40 = arith.constant 0 : index
      %c0_41 = arith.constant 0 : index
      %45 = vector.load %arg8[%c0_40, %c0_41] : memref<64x8xf32, #tpu.memory_space<vmem>>, vector<64x8xf32>
      %c0_42 = arith.constant 0 : index
      %c0_43 = arith.constant 0 : index
      %46 = vector.load %arg5[%c0_42, %c0_43] : memref<1x8xf32, #tpu.memory_space<vmem>>, vector<1x8xf32>
      %47 = vector.broadcast %46 : vector<1x8xf32> to vector<64x8xf32>
      %48 = arith.mulf %45, %47 : vector<64x8xf32>
      %c0_44 = arith.constant 0 : index
      %c0_45 = arith.constant 0 : index
      %49 = vector.load %arg6[%c0_44, %c0_45] : memref<1x8xf32, #tpu.memory_space<vmem>>, vector<1x8xf32>
      %50 = vector.broadcast %49 : vector<1x8xf32> to vector<64x8xf32>
      %51 = arith.addf %48, %50 : vector<64x8xf32>
      %52 = vector.shape_cast %51 : vector<64x8xf32> to vector<8x8x8xf32>
      %c0_46 = arith.constant 0 : index
      %c0_47 = arith.constant 0 : index
      %c0_48 = arith.constant 0 : index
      %c0_49 = arith.constant 0 : index
      %c0_50 = arith.constant 0 : index
      %53 = vector.load %arg7[%c0_46, %c0_47, %c0_48, %c0_49, %c0_50] : memref<1x1x8x8x8xf32, #tpu.memory_space<vmem>>, vector<1x1x8x8x8xf32>
      %54 = vector.shape_cast %53 : vector<1x1x8x8x8xf32> to vector<8x8x8xf32>
      %55 = vector.shape_cast %52 : vector<8x8x8xf32> to vector<1x1x8x8x8xf32>
      tpu.vector_store %arg7[%c0_46, %c0_47, %c0_48, %c0_49, %c0_50], %55 {strides = array<i32>} : memref<1x1x8x8x8xf32, #tpu.memory_space<vmem>>, vector<1x1x8x8x8xf32>,
    } else {
    }
    return
  }
  func.func @transform_0(%arg0: i32, %arg1: i32, %arg2: i32) -> (i32, i32, i32, i32, i32) {
    %c1_i32 = arith.constant 1 : i32
    %0 = arith.muli %arg1, %c1_i32 : i32
    %1 = arith.addi %0, %arg2 : i32
    %c0_i32 = arith.constant 0 : i32
    %c0_i32_0 = arith.constant 0 : i32
    %c0_i32_1 = arith.constant 0 : i32
    %c0_i32_2 = arith.constant 0 : i32
    return %arg0, %1, %c0_i32, %c0_i32_0, %c0_i32_1 : i32, i32, i32, i32, i32
  }
  func.func @transform_1(%arg0: i32, %arg1: i32, %arg2: i32) -> (i32, i32, i32, i32) {
    %c0_i32 = arith.constant 0 : i32
    %c0_i32_0 = arith.constant 0 : i32
    %c0_i32_1 = arith.constant 0 : i32
    %c0_i32_2 = arith.constant 0 : i32
    return %arg2, %c0_i32, %c0_i32_0, %c0_i32_1 : i32, i32, i32, i32
  }
  func.func @transform_2(%arg0: i32, %arg1: i32, %arg2: i32) -> (i32, i32) {
    %c0_i32 = arith.constant 0 : i32
    %c0_i32_0 = arith.constant 0 : i32
    %c0_i32_1 = arith.constant 0 : i32
    return %c0_i32, %c0_i32_0 : i32, i32
  }
  func.func @transform_3(%arg0: i32, %arg1: i32, %arg2: i32) -> (i32, i32) {
    %c0_i32 = arith.constant 0 : i32
    %c0_i32_0 = arith.constant 0 : i32
    %c0_i32_1 = arith.constant 0 : i32
    return %c0_i32, %c0_i32_0 : i32, i32
  }
  func.func @transform_4(%arg0: i32, %arg1: i32, %arg2: i32) -> (i32, i32, i32, i32, i32) {
    %c0_i32 = arith.constant 0 : i32
    %c0_i32_0 = arith.constant 0 : i32
    %c0_i32_1 = arith.constant 0 : i32
    %c0_i32_2 = arith.constant 0 : i32
    return %arg0, %arg1, %c0_i32, %c0_i32_0, %c0_i32_1 : i32, i32, i32, i32, i32
  }
}

</mosaic_0001>

<llo_original>
// kernel: basic_transformation_forward.2
$region0: #{basic_transformation_forward.2}
  #allocation0 [shape = 'u32[]', space=smem, size = 0x4, offset = 0x4, fixed_abs, tag = 'smem constant byte address 0x4 - core index']
  #allocation1 [shape = 'u32[72,128]{1,0:T(1,128)}', space=vmem, size = 0x9000, scoped, tag = 'internal scratch']
  #allocation2 [shape = 'f32[64,8]{1,0:T(8,128)}', space=vmem, size = 0x8000, scoped, tag = 'scratch operand']
  %s0 = inlined_call_operand.vmem [shape: bf16[2,6,10,10,8], index: 0, kind: input, shape index: {}]
  %s1 = inlined_call_operand.vmem [shape: bf16[3,3,24,8], index: 1, kind: input, shape index: {}]
  %s2 = inlined_call_operand.vmem [shape: f32[1,8], index: 2, kind: input, shape index: {}]
  %s3 = inlined_call_operand.vmem [shape: f32[1,8], index: 3, kind: input, shape index: {}]
  %s4 = inlined_call_operand.vmem [shape: bf16[2,2,8,8,8], index: 4, kind: output, shape index: {}]
  %s5 = sld [smem:[#allocation0]]
  $region57: #{basic_transformation_forward.2} parent=0
    _
  %s7 = ssub.s32 1, %s5
  %s8 = scalar_select 0, %s7, %s5
  loop: start=0, step=1, limit=14
  $region2: #{basic_transformation_forward.2} parent=0 // loop_pre_header
    _
  $region3: #{basic_transformation_forward.2} parent=0 // loop_header
    %s10 = sphi 0, %s14
    %p11 = scmp.ge.s32.totalorder %s10, 14
    %s17 = sphi 0, %s36
    %s18 = sphi 0, %s32
    %s19 = sphi 0, %s28
    %s20 = sphi 0, %s17
    %s21 = sphi 0, %s18
    %s22 = sphi 0, %s19
    %s23 = sphi 0, %s20
    %s24 = sphi 0, %s21
    %s25 = sphi 0, %s22
    %s45 = sphi 0, %s47
    %s48 = sphi 0, %s45
    %s49 = sphi 0, %s48
    %s65 = sphi 0, %s49
    %s71 = sphi 0, %s73
    %s74 = sphi 0, %s71
    %s75 = sphi 0, %s74
    %s91 = sphi 0, %s75
    %s95 = sphi 0, %s95
    %s97 = sphi 0, %s95
    %s98 = sphi 0, %s97
    %s112 = sphi 0, %s98
    %s116 = sphi 0, %s116
    %s118 = sphi 0, %s116
    %s119 = sphi 0, %s118
    %s133 = sphi 0, %s119
    %s141 = sphi 0, %s143
    %s144 = sphi 0, %s141
    %s145 = sphi 0, %s144
    %s161 = sphi 0, %s145
  $region4: #{basic_transformation_forward.2} parent=0 // loop_header_branch
    %13 = sbr.rel (%p11) target = $region8
  $region5: #{basic_transformation_forward.2} parent=0 // loop_body
    %s15 = ssub.s32 %s10, 1
    %s16 = ssub.s32 %s10, 2
    %s26 = sadd.s32 1, %s19
    %p27 = scmp.ge.s32.totalorder %s26, 3
    %s28 = scalar_select %p27, 0, %s26
    %s29 = sadd.s32 1, %s18
    %s30 = scalar_select %p27, %s29, %s18
    %p31 = scmp.ge.s32.totalorder %s30, 2
    %s32 = scalar_select %p31, 0, %s30
    %s33 = sadd.s32 1, %s17
    %s34 = scalar_select %p31, %s33, %s17
    %p35 = scmp.ge.s32.totalorder %s34, 2
    %s36 = scalar_select %p35, 0, %s34
    %s37 = smul.u32 %s18, 2
    %s38 = sadd.s32 %s37, %s19
    %s39 = smul.u32 %s32, 2
    %s40 = sadd.s32 %s39, %s28
    %s41 = ssub.s32 %s17, %s36
    %s42 = ssub.s32 %s38, %s40
    %s43 = sor.u32 %s41, %s42
    %p44 = scmp.eq.s32.totalorder %s43, 0
    %s46 = sadd.s32 %s45, 1
    %s47 = scalar_select %p44, %s45, %s46
    %p50 = pneg %p44
    %p51 = scmp.eq.s32.totalorder %s10, 11
    %p52 = por %p50, %p51
    %p53 = scmp.ne.s32.totalorder %s45, %s48
    %p54 = scmp.eq.s32.totalorder %s10, 0
    %p55 = por %p53, %p54
    %p56 = scmp.ne.s32.totalorder %s45, %s48
    %p57 = scmp.eq.s32.totalorder %s15, 11
    %p58 = por %p56, %p57
    %p59 = scmp.ne.s32.totalorder %s48, %s49
    %p60 = scmp.eq.s32.totalorder %s15, 0
    %p61 = por %p59, %p60
    %p62 = scmp.ne.s32.totalorder %s48, %s49
    %p63 = scmp.eq.s32.totalorder %s16, 11
    %p64 = por %p62, %p63
    %p66 = scmp.ne.s32.totalorder %s49, %s65
    %p67 = scmp.eq.s32.totalorder %s16, 0
    %p68 = por %p66, %p67
    %s69 = ssub.s32 %s19, %s28
    %p70 = scmp.eq.s32.totalorder %s69, 0
    %s72 = sadd.s32 %s71, 1
    %s73 = scalar_select %p70, %s71, %s72
    %p76 = pneg %p70
    %p77 = scmp.eq.s32.totalorder %s10, 11
    %p78 = por %p76, %p77
    %p79 = scmp.ne.s32.totalorder %s71, %s74
    %p80 = scmp.eq.s32.totalorder %s10, 0
    %p81 = por %p79, %p80
    %p82 = scmp.ne.s32.totalorder %s71, %s74
    %p83 = scmp.eq.s32.totalorder %s15, 11
    %p84 = por %p82, %p83
    %p85 = scmp.ne.s32.totalorder %s74, %s75
    %p86 = scmp.eq.s32.totalorder %s15, 0
    %p87 = por %p85, %p86
    %p88 = scmp.ne.s32.totalorder %s74, %s75
    %p89 = scmp.eq.s32.totalorder %s16, 11
    %p90 = por %p88, %p89
    %p92 = scmp.ne.s32.totalorder %s75, %s91
    %p93 = scmp.eq.s32.totalorder %s16, 0
    %p94 = por %p92, %p93
    %s96 = sadd.s32 %s95, 1
    %p99 = scmp.eq.s32.totalorder %s10, 11
    %p100 = scmp.ne.s32.totalorder %s95, %s97
    %p101 = scmp.eq.s32.totalorder %s10, 0
    %p102 = por %p100, %p101
    %p103 = scmp.ne.s32.totalorder %s95, %s97
    %p104 = scmp.eq.s32.totalorder %s15, 11
    %p105 = por %p103, %p104
    %p106 = scmp.ne.s32.totalorder %s97, %s98
    %p107 = scmp.eq.s32.totalorder %s15, 0
    %p108 = por %p106, %p107
    %p109 = scmp.ne.s32.totalorder %s97, %s98
    %p110 = scmp.eq.s32.totalorder %s16, 11
    %p111 = por %p109, %p110
    %p113 = scmp.ne.s32.totalorder %s98, %s112
    %p114 = scmp.eq.s32.totalorder %s16, 0
    %p115 = por %p113, %p114
    %s117 = sadd.s32 %s116, 1
    %p120 = scmp.eq.s32.totalorder %s10, 11
    %p121 = scmp.ne.s32.totalorder %s116, %s118
    %p122 = scmp.eq.s32.totalorder %s10, 0
    %p123 = por %p121, %p122
    %p124 = scmp.ne.s32.totalorder %s116, %s118
    %p125 = scmp.eq.s32.totalorder %s15, 11
    %p126 = por %p124, %p125
    %p127 = scmp.ne.s32.totalorder %s118, %s119
    %p128 = scmp.eq.s32.totalorder %s15, 0
    %p129 = por %p127, %p128
    %p130 = scmp.ne.s32.totalorder %s118, %s119
    %p131 = scmp.eq.s32.totalorder %s16, 11
    %p132 = por %p130, %p131
    %p134 = scmp.ne.s32.totalorder %s119, %s133
    %p135 = scmp.eq.s32.totalorder %s16, 0
    %p136 = por %p134, %p135
    %s137 = ssub.s32 %s17, %s36
    %s138 = ssub.s32 %s18, %s32
    %s139 = sor.u32 %s137, %s138
    %p140 = scmp.eq.s32.totalorder %s139, 0
    %s142 = sadd.s32 %s141, 1
    %s143 = scalar_select %p140, %s141, %s142
    %p146 = pneg %p140
    %p147 = scmp.eq.s32.totalorder %s10, 11
    %p148 = por %p146, %p147
    %p149 = scmp.ne.s32.totalorder %s141, %s144
    %p150 = scmp.eq.s32.totalorder %s10, 0
    %p151 = por %p149, %p150
    %p152 = scmp.ne.s32.totalorder %s141, %s144
    %p153 = scmp.eq.s32.totalorder %s15, 11
    %p154 = por %p152, %p153
    %p155 = scmp.ne.s32.totalorder %s144, %s145
    %p156 = scmp.eq.s32.totalorder %s15, 0
    %p157 = por %p155, %p156
    %p158 = scmp.ne.s32.totalorder %s144, %s145
    %p159 = scmp.eq.s32.totalorder %s16, 11
    %p160 = por %p158, %p159
    %p162 = scmp.ne.s32.totalorder %s145, %s161
    %p163 = scmp.eq.s32.totalorder %s16, 0
    %p164 = por %p162, %p163
    %p165 = scmp.le.s32.totalorder 1, %s10
    %p166 = scmp.lt.s32.totalorder %s10, 13
    %p167 = pnand %p165, %p166
    %p168 = pneg %p167
    // Predicated region
    $region9: #{basic_transformation_forward.2} parent=5 // pred_check
      _
    $region10: #{basic_transformation_forward.2} parent=5 // pred_check_branch
      %170 = sbr.rel (%p167) target = $region12
    $region11: #{basic_transformation_forward.2} parent=5 // pred_region
      %s171 = ssub.s32 %s10, 1
      // Predicated region
      $region13: #{basic_transformation_forward.2} parent=11 // pred_check
        %p172 = pneg %p108
      $region14: #{basic_transformation_forward.2} parent=11 // pred_check_branch
        %174 = sbr.rel (%p172) target = $region16
      $region15: #{basic_transformation_forward.2} parent=11 // pred_region
        _
      $region16: #{basic_transformation_forward.2} parent=11 // pred_fallthru
        _
      // Predicated region
      $region17: #{basic_transformation_forward.2} parent=11 // pred_check
        %p175 = pneg %p129
      $region18: #{basic_transformation_forward.2} parent=11 // pred_check_branch
        %177 = sbr.rel (%p175) target = $region20
      $region19: #{basic_transformation_forward.2} parent=11 // pred_region
        _
      $region20: #{basic_transformation_forward.2} parent=11 // pred_fallthru
        _
    $region12: #{basic_transformation_forward.2} parent=5 // pred_fallthru
      _
    %p178 = scmp.lt.s32.totalorder %s10, 12
    // Predicated region
    $region21: #{basic_transformation_forward.2} parent=5 // pred_check
      %p179 = pneg %p178
    $region22: #{basic_transformation_forward.2} parent=5 // pred_check_branch
      %181 = sbr.rel (%p179) target = $region24
    $region23: #{basic_transformation_forward.2} parent=5 // pred_region
      // Predicated region
      $region25: #{basic_transformation_forward.2} parent=23 // pred_check
        %p182 = pneg %p55
      $region26: #{basic_transformation_forward.2} parent=23 // pred_check_branch
        %184 = sbr.rel (%p182) target = $region28
      $region27: #{basic_transformation_forward.2} parent=23 // pred_region
        %s185 = smul.u32 %s18, 2
        %s186 = sadd.s32 %s185, %s19
        %p187 = scmp.lt.s32.totalorder %s17, 1
        %s188 = scalar_select %p187, %s17, 1
        %p189 = scmp.lt.s32.totalorder %s186, 5
        %s190 = scalar_select %p189, %s186, 5
        %s191 = smul.addr %s190, 20
        %s192 = smul.addr %s188, 120
        %s193 = sadd.s32 %s191, %s192
        %s194 = smul.addr %s193, 4
        %s195 = scalar_lea.vmem %s0, %s194
        %s196 = smul.u32 %s18, 2
        %s197 = sadd.s32 %s196, %s19
      $region28: #{basic_transformation_forward.2} parent=23 // pred_fallthru
        _
      // Predicated region
      $region29: #{basic_transformation_forward.2} parent=23 // pred_check
        %p198 = pneg %p81
      $region30: #{basic_transformation_forward.2} parent=23 // pred_check_branch
        %200 = sbr.rel (%p198) target = $region32
      $region31: #{basic_transformation_forward.2} parent=23 // pred_region
        %p201 = scmp.lt.s32.totalorder %s19, 2
        %s202 = scalar_select %p201, %s19, 2
        %s203 = smul.addr %s202, 9
        %s204 = smul.addr %s203, 4
        %s205 = scalar_lea.vmem %s1, %s204
      $region32: #{basic_transformation_forward.2} parent=23 // pred_fallthru
        _
    $region24: #{basic_transformation_forward.2} parent=5 // pred_fallthru
      _
    %p206 = scmp.le.s32.totalorder 1, %s10
    %p207 = scmp.lt.s32.totalorder %s10, 13
    %p208 = pnand %p206, %p207
    %p209 = pneg %p208
    // Predicated region
    $region33: #{basic_transformation_forward.2} parent=5 // pred_check
      _
    $region34: #{basic_transformation_forward.2} parent=5 // pred_check_branch
      %211 = sbr.rel (%p208) target = $region36
    $region35: #{basic_transformation_forward.2} parent=5 // pred_region
      %s212 = ssub.s32 %s10, 1
      %s213 = smul.u32 %s21, 2
      %s214 = sadd.s32 %s213, %s22
      %p215 = scmp.lt.s32.totalorder %s20, 1
      %s216 = scalar_select %p215, %s20, 1
      %p217 = scmp.lt.s32.totalorder %s214, 5
      %s218 = scalar_select %p217, %s214, 5
      %s219 = smul.addr %s218, 20
      %s220 = smul.addr %s216, 120
      %s221 = sadd.s32 %s219, %s220
      %s222 = smul.addr %s221, 4
      %s223 = scalar_lea.vmem %s0, %s222
      %p224 = pneg %p61
      %p225 = pneg %p58
      %p226 = scmp.lt.s32.totalorder %s22, 2
      %s227 = scalar_select %p226, %s22, 2
      %s228 = smul.addr %s227, 9
      %s229 = smul.addr %s228, 4
      %s230 = scalar_lea.vmem %s1, %s229
      %p231 = pneg %p87
      %p232 = pneg %p84
      %p233 = pneg %p108
      %p234 = pneg %p105
      %p235 = pneg %p129
      %p236 = pneg %p126
      %p237 = pneg %p157
      %p238 = pneg %p154
      %p239 = scmp.lt.s32.totalorder %s20, 1
      %s240 = scalar_select %p239, %s20, 1
      %p241 = scmp.lt.s32.totalorder %s21, 1
      %s242 = scalar_select %p241, %s21, 1
      %s243 = smul.addr %s242, 8
      %s244 = smul.addr %s240, 16
      %s245 = sadd.s32 %s243, %s244
      %s246 = smul.addr %s245, 4
      %s247 = scalar_lea.vmem %s4, %s246
      %s248 = smul.u32 %s21, 2
      %s249 = sadd.s32 %s248, %s22
      %p250 = scmp.lt.s32.totalorder %s20, 1
      %s251 = scalar_select %p250, %s20, 1
      %p252 = scmp.lt.s32.totalorder %s249, 5
      %s253 = scalar_select %p252, %s249, 5
      %s254 = smul.addr %s253, 20
      %s255 = smul.addr %s251, 120
      %s256 = sadd.s32 %s254, %s255
      %s257 = smul.addr %s256, 4
      %s258 = scalar_lea.vmem %s0, %s257
      %s259 = smul.u32 %s21, 2
      %s260 = sadd.s32 %s259, %s22
      %p261 = scmp.lt.s32.totalorder %s22, 2
      %s262 = scalar_select %p261, %s22, 2
      %s263 = smul.addr %s262, 9
      %s264 = smul.addr %s263, 4
      %s265 = scalar_lea.vmem %s1, %s264
      %p266 = scmp.lt.s32.totalorder %s20, 1
      %s267 = scalar_select %p266, %s20, 1
      %p268 = scmp.lt.s32.totalorder %s21, 1
      %s269 = scalar_select %p268, %s21, 1
      %s270 = smul.addr %s269, 8
      %s271 = smul.addr %s267, 16
      %s272 = sadd.s32 %s270, %s271
      %s273 = smul.addr %s272, 4
      %s274 = scalar_lea.vmem %s4, %s273
      %p276 = scmp.eq.s32.totalorder %s22, 0
      // Predicated region
      $region37: #{basic_transformation_forward.2} parent=35 // pred_check
        %p277 = pneg %p276
      $region38: #{basic_transformation_forward.2} parent=35 // pred_check_branch
        %279 = sbr.rel (%p277) target = $region40
      $region39: #{basic_transformation_forward.2} parent=35 // pred_region
        %vm280 = vcmask 64512
        %281 = vst.msk [vmem:[#allocation2] sm:$0xff] %vm280, 0.0
        %282 = vst.msk [vmem:[#allocation2 + $0x8] sm:$0xff] %vm280, 0.0
        %283 = vst.msk [vmem:[#allocation2 + $0x10] sm:$0xff] %vm280, 0.0
        %284 = vst.msk [vmem:[#allocation2 + $0x18] sm:$0xff] %vm280, 0.0
        %285 = vst.msk [vmem:[#allocation2 + $0x20] sm:$0xff] %vm280, 0.0
        %286 = vst.msk [vmem:[#allocation2 + $0x28] sm:$0xff] %vm280, 0.0
        %287 = vst.msk [vmem:[#allocation2 + $0x30] sm:$0xff] %vm280, 0.0
        %288 = vst.msk [vmem:[#allocation2 + $0x38] sm:$0xff] %vm280, 0.0
      $region40: #{basic_transformation_forward.2} parent=35 // pred_fallthru
        _
      %v289 = vld [vmem:[%s258] sm:$0xf]
      %v290 = vld [vmem:[%s258 + $0x4] sm:$0x1]
      %v291 = vld [vmem:[%s258 + $0x8] sm:$0xf]
      %v292 = vld [vmem:[%s258 + $0xc] sm:$0x1]
      %v293 = vld [vmem:[%s258 + $0x10] sm:$0xf]
      %v294 = vld [vmem:[%s258 + $0x14] sm:$0x1]
      %v295 = vld [vmem:[%s258 + $0x18] sm:$0xf]
      %v296 = vld [vmem:[%s258 + $0x1c] sm:$0x1]
      %v297 = vld [vmem:[%s258 + $0x20] sm:$0xf]
      %v298 = vld [vmem:[%s258 + $0x24] sm:$0x1]
      %v299 = vld [vmem:[%s258 + $0x28] sm:$0xf]
      %v300 = vld [vmem:[%s258 + $0x2c] sm:$0x1]
      %v301 = vld [vmem:[%s258 + $0x30] sm:$0xf]
      %v302 = vld [vmem:[%s258 + $0x34] sm:$0x1]
      %v303 = vld [vmem:[%s258 + $0x38] sm:$0xf]
      %v304 = vld [vmem:[%s258 + $0x3c] sm:$0x1]
      %v321 = vunpack.c.l.b16 %v289
      %v322 = vunpack.c.l.b16 %v290
      %v323 = vunpack.c.l.b16 %v291
      %v324 = vunpack.c.l.b16 %v292
      %v325 = vunpack.c.l.b16 %v293
      %v326 = vunpack.c.l.b16 %v294
      %v327 = vunpack.c.l.b16 %v295
      %v328 = vunpack.c.l.b16 %v296
      %v329 = vunpack.c.l.b16 %v297
      %v330 = vunpack.c.l.b16 %v298
      %v331 = vunpack.c.l.b16 %v299
      %v332 = vunpack.c.l.b16 %v300
      %v333 = vunpack.c.l.b16 %v301
      %v334 = vunpack.c.l.b16 %v302
      %v335 = vunpack.c.l.b16 %v303
      %v336 = vunpack.c.l.b16 %v304
      %v337 = vpack.c.b16 %v322, %v321
      %v338 = vpack.c.b16 %v324, %v323
      %v339 = vpack.c.b16 %v326, %v325
      %v340 = vpack.c.b16 %v328, %v327
      %v341 = vpack.c.b16 %v330, %v329
      %v342 = vpack.c.b16 %v332, %v331
      %v343 = vpack.c.b16 %v334, %v333
      %v344 = vpack.c.b16 %v336, %v335
      %v346 = vshrl.u32 %v337, 16
      %v348 = vshll.u32 %v337, 16
      %v350 = vrot.slane %v348, 1
      %v351 = vor.u32 %v346, %v350
      %v353 = vshrl.u32 %v338, 16
      %v355 = vshll.u32 %v338, 16
      %v357 = vrot.slane %v355, 1
      %v358 = vor.u32 %v353, %v357
      %v360 = vshrl.u32 %v339, 16
      %v362 = vshll.u32 %v339, 16
      %v364 = vrot.slane %v362, 1
      %v365 = vor.u32 %v360, %v364
      %v367 = vshrl.u32 %v340, 16
      %v369 = vshll.u32 %v340, 16
      %v371 = vrot.slane %v369, 1
      %v372 = vor.u32 %v367, %v371
      %v374 = vshrl.u32 %v341, 16
      %v376 = vshll.u32 %v341, 16
      %v378 = vrot.slane %v376, 1
      %v379 = vor.u32 %v374, %v378
      %v381 = vshrl.u32 %v342, 16
      %v383 = vshll.u32 %v342, 16
      %v385 = vrot.slane %v383, 1
      %v386 = vor.u32 %v381, %v385
      %v388 = vshrl.u32 %v343, 16
      %v390 = vshll.u32 %v343, 16
      %v392 = vrot.slane %v390, 1
      %v393 = vor.u32 %v388, %v392
      %v395 = vshrl.u32 %v344, 16
      %v397 = vshll.u32 %v344, 16
      %v399 = vrot.slane %v397, 1
      %v400 = vor.u32 %v395, %v399
      %401 = vrot.lane.b32.xlu0 %v351, 8
      %v402 = vpop.permute.xlu0 %401
      %403 = vrot.lane.b32.xlu0 %v358, 8
      %v404 = vpop.permute.xlu0 %403
      %405 = vrot.lane.b32.xlu0 %v365, 8
      %v406 = vpop.permute.xlu0 %405
      %407 = vrot.lane.b32.xlu0 %v372, 8
      %v408 = vpop.permute.xlu0 %407
      %409 = vrot.lane.b32.xlu0 %v379, 8
      %v410 = vpop.permute.xlu0 %409
      %411 = vrot.lane.b32.xlu0 %v386, 8
      %v412 = vpop.permute.xlu0 %411
      %413 = vrot.lane.b32.xlu0 %v393, 8
      %v414 = vpop.permute.xlu0 %413
      %415 = vrot.lane.b32.xlu0 %v400, 8
      %v416 = vpop.permute.xlu0 %415
      %v417 = vrot.slane %v337, 1
      %v418 = vrot.slane %v338, 1
      %v419 = vrot.slane %v339, 1
      %v420 = vrot.slane %v340, 1
      %v421 = vrot.slane %v341, 1
      %v422 = vrot.slane %v342, 1
      %v423 = vrot.slane %v343, 1
      %v424 = vrot.slane %v344, 1
      %425 = vrot.lane.b32.xlu0 %v417, 16
      %v426 = vpop.permute.xlu0 %425
      %427 = vrot.lane.b32.xlu0 %v418, 16
      %v428 = vpop.permute.xlu0 %427
      %429 = vrot.lane.b32.xlu0 %v419, 16
      %v430 = vpop.permute.xlu0 %429
      %431 = vrot.lane.b32.xlu0 %v420, 16
      %v432 = vpop.permute.xlu0 %431
      %433 = vrot.lane.b32.xlu0 %v421, 16
      %v434 = vpop.permute.xlu0 %433
      %435 = vrot.lane.b32.xlu0 %v422, 16
      %v436 = vpop.permute.xlu0 %435
      %437 = vrot.lane.b32.xlu0 %v423, 16
      %v438 = vpop.permute.xlu0 %437
      %439 = vrot.lane.b32.xlu0 %v424, 16
      %v440 = vpop.permute.xlu0 %439
      %vm441 = vcmask 64512
      %v444 = vsel %vm441, %v289, %v402
      %v447 = vsel %vm441, %v291, %v404
      %v450 = vsel %vm441, %v293, %v406
      %v453 = vsel %vm441, %v295, %v408
      %v456 = vsel %vm441, %v297, %v410
      %v459 = vsel %vm441, %v299, %v412
      %v462 = vsel %vm441, %v301, %v414
      %v465 = vsel %vm441, %v303, %v416
      %vm466 = vcmask 130048
      %v468 = vsel %vm466, %v444, %v426
      %v470 = vsel %vm466, %v447, %v428
      %v472 = vsel %vm466, %v450, %v430
      %v474 = vsel %vm466, %v453, %v432
      %v476 = vsel %vm466, %v456, %v434
      %v478 = vsel %vm466, %v459, %v436
      %v480 = vsel %vm466, %v462, %v438
      %v482 = vsel %vm466, %v465, %v440
      %v483 = vld [vmem:[#allocation2] sm:$0xff]
      %v484 = vld [vmem:[#allocation2 + $0x8] sm:$0xff]
      %v485 = vld [vmem:[#allocation2 + $0x10] sm:$0xff]
      %v486 = vld [vmem:[#allocation2 + $0x18] sm:$0xff]
      %v487 = vld [vmem:[#allocation2 + $0x20] sm:$0xff]
      %v488 = vld [vmem:[#allocation2 + $0x28] sm:$0xff]
      %v489 = vld [vmem:[#allocation2 + $0x30] sm:$0xff]
      %v490 = vld [vmem:[#allocation2 + $0x38] sm:$0xff]
      %v491 = vld [vmem:[%s265] sm:$0xf]
      %v492 = vld [vmem:[%s265 + $0x4] sm:$0xf]
      %v493 = vld [vmem:[%s265 + $0x8] sm:$0xf]
      %v502 = vunpack.c.l.b16 %v468
      %v503 = vunpack.c.l.b16 %v470
      %v504 = vunpack.c.l.b16 %v472
      %v505 = vunpack.c.l.b16 %v474
      %v506 = vunpack.c.l.b16 %v476
      %v507 = vunpack.c.l.b16 %v478
      %v508 = vunpack.c.l.b16 %v480
      %v509 = vunpack.c.l.b16 %v482
      %v510 = vpack.c.b16 %v503, %v502
      %v511 = vpack.c.b16 %v505, %v504
      %v512 = vpack.c.b16 %v507, %v506
      %v513 = vpack.c.b16 %v509, %v508
      %v517 = vunpack.c.l.b16 %v491
      %v518 = vunpack.c.l.b16 %v492
      %v519 = vunpack.c.l.b16 %v493
      %v520 = vpack.c.b16 %v518, %v517
      %v521 = vpack.c.b16 %v519, %v519
      %vm523 = vcmask 195584
      %v525 = vsel %vm523, %v510, 0
      %v528 = vsel %vm523, %v511, 0
      %v531 = vsel %vm523, %v512, 0
      %v534 = vsel %vm523, %v513, 0
      %vm536 = vcmask 1043456
      %v538 = vsel %vm536, %v521, 0
      %540 = vmatpush.bf16.msra.mxu0 0
      %541 = vmatpush.bf16.msra.mxu0 0
      %542 = vmatpush.bf16.msra.mxu0 0
      %543 = vmatpush.bf16.msra.mxu0 0
      %544 = vmatpush.bf16.msra.mxu0 0
      %545 = vmatpush.bf16.msra.mxu0 0
      %546 = vmatpush.bf16.msra.mxu0 %v538
      %547 = vmatpush.bf16.msra.mxu0 %v520
      %548 = vmatmul.bf16.gmra.mxu0 %v525
      %v549 = vpop.f32.mrf.mxu0
      %v550 = vadd.f32 0.0, %v549
      %v551 = vpop.f32.mrf.mxu0
      %v552 = vadd.f32 0.0, %v551
      %553 = vmatmul.bf16.gmra.mxu0 %v528
      %v554 = vpop.f32.mrf.mxu0
      %v555 = vadd.f32 0.0, %v554
      %v556 = vpop.f32.mrf.mxu0
      %v557 = vadd.f32 0.0, %v556
      %558 = vmatmul.bf16.gmra.mxu0 %v531
      %v559 = vpop.f32.mrf.mxu0
      %v560 = vadd.f32 0.0, %v559
      %v561 = vpop.f32.mrf.mxu0
      %v562 = vadd.f32 0.0, %v561
      %563 = vmatmul.bf16.gmra.mxu0 %v534
      %v564 = vpop.f32.mrf.mxu0
      %v565 = vadd.f32 0.0, %v564
      %v566 = vpop.f32.mrf.mxu0
      %v567 = vadd.f32 0.0, %v566
      %568 = vdwg.mxu0
      %v569 = vadd.f32 %v483, %v550
      %v570 = vadd.f32 %v484, %v552
      %v571 = vadd.f32 %v485, %v555
      %v572 = vadd.f32 %v486, %v557
      %v573 = vadd.f32 %v487, %v560
      %v574 = vadd.f32 %v488, %v562
      %v575 = vadd.f32 %v489, %v565
      %v576 = vadd.f32 %v490, %v567
      %577 = vst.msk [vmem:[#allocation2] sm:$0xff] %vm441, %v569
      %578 = vst.msk [vmem:[#allocation2 + $0x8] sm:$0xff] %vm441, %v570
      %579 = vst.msk [vmem:[#allocation2 + $0x10] sm:$0xff] %vm441, %v571
      %580 = vst.msk [vmem:[#allocation2 + $0x18] sm:$0xff] %vm441, %v572
      %581 = vst.msk [vmem:[#allocation2 + $0x20] sm:$0xff] %vm441, %v573
      %582 = vst.msk [vmem:[#allocation2 + $0x28] sm:$0xff] %vm441, %v574
      %583 = vst.msk [vmem:[#allocation2 + $0x30] sm:$0xff] %vm441, %v575
      %584 = vst.msk [vmem:[#allocation2 + $0x38] sm:$0xff] %vm441, %v576
      %s585 = scalar_lea.vmem %s258, 8
      %v586 = vld [vmem:[%s585] sm:$0xf]
      %v587 = vld [vmem:[%s585 + $0x4] sm:$0x1]
      %v588 = vld [vmem:[%s585 + $0x8] sm:$0xf]
      %v589 = vld [vmem:[%s585 + $0xc] sm:$0x1]
      %v590 = vld [vmem:[%s585 + $0x10] sm:$0xf]
      %v591 = vld [vmem:[%s585 + $0x14] sm:$0x1]
      %v592 = vld [vmem:[%s585 + $0x18] sm:$0xf]
      %v593 = vld [vmem:[%s585 + $0x1c] sm:$0x1]
      %v594 = vld [vmem:[%s585 + $0x20] sm:$0xf]
      %v595 = vld [vmem:[%s585 + $0x24] sm:$0x1]
      %v596 = vld [vmem:[%s585 + $0x28] sm:$0xf]
      %v597 = vld [vmem:[%s585 + $0x2c] sm:$0x1]
      %v598 = vld [vmem:[%s585 + $0x30] sm:$0xf]
      %v599 = vld [vmem:[%s585 + $0x34] sm:$0x1]
      %v600 = vld [vmem:[%s585 + $0x38] sm:$0xf]
      %v601 = vld [vmem:[%s585 + $0x3c] sm:$0x1]
      %v618 = vunpack.c.l.b16 %v586
      %v619 = vunpack.c.l.b16 %v587
      %v620 = vunpack.c.l.b16 %v588
      %v621 = vunpack.c.l.b16 %v589
      %v622 = vunpack.c.l.b16 %v590
      %v623 = vunpack.c.l.b16 %v591
      %v624 = vunpack.c.l.b16 %v592
      %v625 = vunpack.c.l.b16 %v593
      %v626 = vunpack.c.l.b16 %v594
      %v627 = vunpack.c.l.b16 %v595
      %v628 = vunpack.c.l.b16 %v596
      %v629 = vunpack.c.l.b16 %v597
      %v630 = vunpack.c.l.b16 %v598
      %v631 = vunpack.c.l.b16 %v599
      %v632 = vunpack.c.l.b16 %v600
      %v633 = vunpack.c.l.b16 %v601
      %v634 = vpack.c.b16 %v619, %v618
      %v635 = vpack.c.b16 %v621, %v620
      %v636 = vpack.c.b16 %v623, %v622
      %v637 = vpack.c.b16 %v625, %v624
      %v638 = vpack.c.b16 %v627, %v626
      %v639 = vpack.c.b16 %v629, %v628
      %v640 = vpack.c.b16 %v631, %v630
      %v641 = vpack.c.b16 %v633, %v632
      %v643 = vshrl.u32 %v634, 16
      %v645 = vshll.u32 %v634, 16
      %v647 = vrot.slane %v645, 1
      %v648 = vor.u32 %v643, %v647
      %v650 = vshrl.u32 %v635, 16
      %v652 = vshll.u32 %v635, 16
      %v654 = vrot.slane %v652, 1
      %v655 = vor.u32 %v650, %v654
      %v657 = vshrl.u32 %v636, 16
      %v659 = vshll.u32 %v636, 16
      %v661 = vrot.slane %v659, 1
      %v662 = vor.u32 %v657, %v661
      %v664 = vshrl.u32 %v637, 16
      %v666 = vshll.u32 %v637, 16
      %v668 = vrot.slane %v666, 1
      %v669 = vor.u32 %v664, %v668
      %v671 = vshrl.u32 %v638, 16
      %v673 = vshll.u32 %v638, 16
      %v675 = vrot.slane %v673, 1
      %v676 = vor.u32 %v671, %v675
      %v678 = vshrl.u32 %v639, 16
      %v680 = vshll.u32 %v639, 16
      %v682 = vrot.slane %v680, 1
      %v683 = vor.u32 %v678, %v682
      %v685 = vshrl.u32 %v640, 16
      %v687 = vshll.u32 %v640, 16
      %v689 = vrot.slane %v687, 1
      %v690 = vor.u32 %v685, %v689
      %v692 = vshrl.u32 %v641, 16
      %v694 = vshll.u32 %v641, 16
      %v696 = vrot.slane %v694, 1
      %v697 = vor.u32 %v692, %v696
      %698 = vrot.lane.b32.xlu0 %v648, 8
      %v699 = vpop.permute.xlu0 %698
      %700 = vrot.lane.b32.xlu0 %v655, 8
      %v701 = vpop.permute.xlu0 %700
      %702 = vrot.lane.b32.xlu0 %v662, 8
      %v703 = vpop.permute.xlu0 %702
      %704 = vrot.lane.b32.xlu0 %v669, 8
      %v705 = vpop.permute.xlu0 %704
      %706 = vrot.lane.b32.xlu0 %v676, 8
      %v707 = vpop.permute.xlu0 %706
      %708 = vrot.lane.b32.xlu0 %v683, 8
      %v709 = vpop.permute.xlu0 %708
      %710 = vrot.lane.b32.xlu0 %v690, 8
      %v711 = vpop.permute.xlu0 %710
      %712 = vrot.lane.b32.xlu0 %v697, 8
      %v713 = vpop.permute.xlu0 %712
      %v714 = vrot.slane %v634, 1
      %v715 = vrot.slane %v635, 1
      %v716 = vrot.slane %v636, 1
      %v717 = vrot.slane %v637, 1
      %v718 = vrot.slane %v638, 1
      %v719 = vrot.slane %v639, 1
      %v720 = vrot.slane %v640, 1
      %v721 = vrot.slane %v641, 1
      %722 = vrot.lane.b32.xlu0 %v714, 16
      %v723 = vpop.permute.xlu0 %722
      %724 = vrot.lane.b32.xlu0 %v715, 16
      %v725 = vpop.permute.xlu0 %724
      %726 = vrot.lane.b32.xlu0 %v716, 16
      %v727 = vpop.permute.xlu0 %726
      %728 = vrot.lane.b32.xlu0 %v717, 16
      %v729 = vpop.permute.xlu0 %728
      %730 = vrot.lane.b32.xlu0 %v718, 16
      %v731 = vpop.permute.xlu0 %730
      %732 = vrot.lane.b32.xlu0 %v719, 16
      %v733 = vpop.permute.xlu0 %732
      %734 = vrot.lane.b32.xlu0 %v720, 16
      %v735 = vpop.permute.xlu0 %734
      %736 = vrot.lane.b32.xlu0 %v721, 16
      %v737 = vpop.permute.xlu0 %736
      %v740 = vsel %vm441, %v586, %v699
      %v743 = vsel %vm441, %v588, %v701
      %v746 = vsel %vm441, %v590, %v703
      %v749 = vsel %vm441, %v592, %v705
      %v752 = vsel %vm441, %v594, %v707
      %v755 = vsel %vm441, %v596, %v709
      %v758 = vsel %vm441, %v598, %v711
      %v761 = vsel %vm441, %v600, %v713
      %v763 = vsel %vm466, %v740, %v723
      %v765 = vsel %vm466, %v743, %v725
      %v767 = vsel %vm466, %v746, %v727
      %v769 = vsel %vm466, %v749, %v729
      %v771 = vsel %vm466, %v752, %v731
      %v773 = vsel %vm466, %v755, %v733
      %v775 = vsel %vm466, %v758, %v735
      %v777 = vsel %vm466, %v761, %v737
      %v778 = vld [vmem:[#allocation2] sm:$0xff]
      %v779 = vld [vmem:[#allocation2 + $0x8] sm:$0xff]
      %v780 = vld [vmem:[#allocation2 + $0x10] sm:$0xff]
      %v781 = vld [vmem:[#allocation2 + $0x18] sm:$0xff]
      %v782 = vld [vmem:[#allocation2 + $0x20] sm:$0xff]
      %v783 = vld [vmem:[#allocation2 + $0x28] sm:$0xff]
      %v784 = vld [vmem:[#allocation2 + $0x30] sm:$0xff]
      %v785 = vld [vmem:[#allocation2 + $0x38] sm:$0xff]
      %s786 = scalar_lea.vmem %s265, 12
      %v787 = vld [vmem:[%s786] sm:$0xf]
      %v788 = vld [vmem:[%s786 + $0x4] sm:$0xf]
      %v789 = vld [vmem:[%s786 + $0x8] sm:$0xf]
      %v798 = vunpack.c.l.b16 %v763
      %v799 = vunpack.c.l.b16 %v765
      %v800 = vunpack.c.l.b16 %v767
      %v801 = vunpack.c.l.b16 %v769
      %v802 = vunpack.c.l.b16 %v771
      %v803 = vunpack.c.l.b16 %v773
      %v804 = vunpack.c.l.b16 %v775
      %v805 = vunpack.c.l.b16 %v777
      %v806 = vpack.c.b16 %v799, %v798
      %v807 = vpack.c.b16 %v801, %v800
      %v808 = vpack.c.b16 %v803, %v802
      %v809 = vpack.c.b16 %v805, %v804
      %v813 = vunpack.c.l.b16 %v787
      %v814 = vunpack.c.l.b16 %v788
      %v815 = vunpack.c.l.b16 %v789
      %v816 = vpack.c.b16 %v814, %v813
      %v817 = vpack.c.b16 %v815, %v815
      %v820 = vsel %vm523, %v806, 0
      %v823 = vsel %vm523, %v807, 0
      %v826 = vsel %vm523, %v808, 0
      %v829 = vsel %vm523, %v809, 0
      %v832 = vsel %vm536, %v817, 0
      %834 = vmatpush.bf16.msra.mxu0 0
      %835 = vmatpush.bf16.msra.mxu0 0
      %836 = vmatpush.bf16.msra.mxu0 0
      %837 = vmatpush.bf16.msra.mxu0 0
      %838 = vmatpush.bf16.msra.mxu0 0
      %839 = vmatpush.bf16.msra.mxu0 0
      %840 = vmatpush.bf16.msra.mxu0 %v832
      %841 = vmatpush.bf16.msra.mxu0 %v816
      %842 = vmatmul.bf16.gmra.mxu0 %v820
      %v843 = vpop.f32.mrf.mxu0
      %v844 = vadd.f32 0.0, %v843
      %v845 = vpop.f32.mrf.mxu0
      %v846 = vadd.f32 0.0, %v845
      %847 = vmatmul.bf16.gmra.mxu0 %v823
      %v848 = vpop.f32.mrf.mxu0
      %v849 = vadd.f32 0.0, %v848
      %v850 = vpop.f32.mrf.mxu0
      %v851 = vadd.f32 0.0, %v850
      %852 = vmatmul.bf16.gmra.mxu0 %v826
      %v853 = vpop.f32.mrf.mxu0
      %v854 = vadd.f32 0.0, %v853
      %v855 = vpop.f32.mrf.mxu0
      %v856 = vadd.f32 0.0, %v855
      %857 = vmatmul.bf16.gmra.mxu0 %v829
      %v858 = vpop.f32.mrf.mxu0
      %v859 = vadd.f32 0.0, %v858
      %v860 = vpop.f32.mrf.mxu0
      %v861 = vadd.f32 0.0, %v860
      %862 = vdwg.mxu0
      %v863 = vadd.f32 %v778, %v844
      %v864 = vadd.f32 %v779, %v846
      %v865 = vadd.f32 %v780, %v849
      %v866 = vadd.f32 %v781, %v851
      %v867 = vadd.f32 %v782, %v854
      %v868 = vadd.f32 %v783, %v856
      %v869 = vadd.f32 %v784, %v859
      %v870 = vadd.f32 %v785, %v861
      %871 = vst.msk [vmem:[#allocation2] sm:$0xff] %vm441, %v863
      %872 = vst.msk [vmem:[#allocation2 + $0x8] sm:$0xff] %vm441, %v864
      %873 = vst.msk [vmem:[#allocation2 + $0x10] sm:$0xff] %vm441, %v865
      %874 = vst.msk [vmem:[#allocation2 + $0x18] sm:$0xff] %vm441, %v866
      %875 = vst.msk [vmem:[#allocation2 + $0x20] sm:$0xff] %vm441, %v867
      %876 = vst.msk [vmem:[#allocation2 + $0x28] sm:$0xff] %vm441, %v868
      %877 = vst.msk [vmem:[#allocation2 + $0x30] sm:$0xff] %vm441, %v869
      %878 = vst.msk [vmem:[#allocation2 + $0x38] sm:$0xff] %vm441, %v870
      %s879 = scalar_lea.vmem %s258, 16
      %v880 = vld [vmem:[%s879] sm:$0xf]
      %v881 = vld [vmem:[%s879 + $0x4] sm:$0x1]
      %v882 = vld [vmem:[%s879 + $0x8] sm:$0xf]
      %v883 = vld [vmem:[%s879 + $0xc] sm:$0x1]
      %v884 = vld [vmem:[%s879 + $0x10] sm:$0xf]
      %v885 = vld [vmem:[%s879 + $0x14] sm:$0x1]
      %v886 = vld [vmem:[%s879 + $0x18] sm:$0xf]
      %v887 = vld [vmem:[%s879 + $0x1c] sm:$0x1]
      %v888 = vld [vmem:[%s879 + $0x20] sm:$0xf]
      %v889 = vld [vmem:[%s879 + $0x24] sm:$0x1]
      %v890 = vld [vmem:[%s879 + $0x28] sm:$0xf]
      %v891 = vld [vmem:[%s879 + $0x2c] sm:$0x1]
      %v892 = vld [vmem:[%s879 + $0x30] sm:$0xf]
      %v893 = vld [vmem:[%s879 + $0x34] sm:$0x1]
      %v894 = vld [vmem:[%s879 + $0x38] sm:$0xf]
      %v895 = vld [vmem:[%s879 + $0x3c] sm:$0x1]
      %v912 = vunpack.c.l.b16 %v880
      %v913 = vunpack.c.l.b16 %v881
      %v914 = vunpack.c.l.b16 %v882
      %v915 = vunpack.c.l.b16 %v883
      %v916 = vunpack.c.l.b16 %v884
      %v917 = vunpack.c.l.b16 %v885
      %v918 = vunpack.c.l.b16 %v886
      %v919 = vunpack.c.l.b16 %v887
      %v920 = vunpack.c.l.b16 %v888
      %v921 = vunpack.c.l.b16 %v889
      %v922 = vunpack.c.l.b16 %v890
      %v923 = vunpack.c.l.b16 %v891
      %v924 = vunpack.c.l.b16 %v892
      %v925 = vunpack.c.l.b16 %v893
      %v926 = vunpack.c.l.b16 %v894
      %v927 = vunpack.c.l.b16 %v895
      %v928 = vpack.c.b16 %v913, %v912
      %v929 = vpack.c.b16 %v915, %v914
      %v930 = vpack.c.b16 %v917, %v916
      %v931 = vpack.c.b16 %v919, %v918
      %v932 = vpack.c.b16 %v921, %v920
      %v933 = vpack.c.b16 %v923, %v922
      %v934 = vpack.c.b16 %v925, %v924
      %v935 = vpack.c.b16 %v927, %v926
      %v937 = vshrl.u32 %v928, 16
      %v939 = vshll.u32 %v928, 16
      %v941 = vrot.slane %v939, 1
      %v942 = vor.u32 %v937, %v941
      %v944 = vshrl.u32 %v929, 16
      %v946 = vshll.u32 %v929, 16
      %v948 = vrot.slane %v946, 1
      %v949 = vor.u32 %v944, %v948
      %v951 = vshrl.u32 %v930, 16
      %v953 = vshll.u32 %v930, 16
      %v955 = vrot.slane %v953, 1
      %v956 = vor.u32 %v951, %v955
      %v958 = vshrl.u32 %v931, 16
      %v960 = vshll.u32 %v931, 16
      %v962 = vrot.slane %v960, 1
      %v963 = vor.u32 %v958, %v962
      %v965 = vshrl.u32 %v932, 16
      %v967 = vshll.u32 %v932, 16
      %v969 = vrot.slane %v967, 1
      %v970 = vor.u32 %v965, %v969
      %v972 = vshrl.u32 %v933, 16
      %v974 = vshll.u32 %v933, 16
      %v976 = vrot.slane %v974, 1
      %v977 = vor.u32 %v972, %v976
      %v979 = vshrl.u32 %v934, 16
      %v981 = vshll.u32 %v934, 16
      %v983 = vrot.slane %v981, 1
      %v984 = vor.u32 %v979, %v983
      %v986 = vshrl.u32 %v935, 16
      %v988 = vshll.u32 %v935, 16
      %v990 = vrot.slane %v988, 1
      %v991 = vor.u32 %v986, %v990
      %992 = vrot.lane.b32.xlu0 %v942, 8
      %v993 = vpop.permute.xlu0 %992
      %994 = vrot.lane.b32.xlu0 %v949, 8
      %v995 = vpop.permute.xlu0 %994
      %996 = vrot.lane.b32.xlu0 %v956, 8
      %v997 = vpop.permute.xlu0 %996
      %998 = vrot.lane.b32.xlu0 %v963, 8
      %v999 = vpop.permute.xlu0 %998
      %1000 = vrot.lane.b32.xlu0 %v970, 8
      %v1001 = vpop.permute.xlu0 %1000
      %1002 = vrot.lane.b32.xlu0 %v977, 8
      %v1003 = vpop.permute.xlu0 %1002
      %1004 = vrot.lane.b32.xlu0 %v984, 8
      %v1005 = vpop.permute.xlu0 %1004
      %1006 = vrot.lane.b32.xlu0 %v991, 8
      %v1007 = vpop.permute.xlu0 %1006
      %v1008 = vrot.slane %v928, 1
      %v1009 = vrot.slane %v929, 1
      %v1010 = vrot.slane %v930, 1
      %v1011 = vrot.slane %v931, 1
      %v1012 = vrot.slane %v932, 1
      %v1013 = vrot.slane %v933, 1
      %v1014 = vrot.slane %v934, 1
      %v1015 = vrot.slane %v935, 1
      %1016 = vrot.lane.b32.xlu0 %v1008, 16
      %v1017 = vpop.permute.xlu0 %1016
      %1018 = vrot.lane.b32.xlu0 %v1009, 16
      %v1019 = vpop.permute.xlu0 %1018
      %1020 = vrot.lane.b32.xlu0 %v1010, 16
      %v1021 = vpop.permute.xlu0 %1020
      %1022 = vrot.lane.b32.xlu0 %v1011, 16
      %v1023 = vpop.permute.xlu0 %1022
      %1024 = vrot.lane.b32.xlu0 %v1012, 16
      %v1025 = vpop.permute.xlu0 %1024
      %1026 = vrot.lane.b32.xlu0 %v1013, 16
      %v1027 = vpop.permute.xlu0 %1026
      %1028 = vrot.lane.b32.xlu0 %v1014, 16
      %v1029 = vpop.permute.xlu0 %1028
      %1030 = vrot.lane.b32.xlu0 %v1015, 16
      %v1031 = vpop.permute.xlu0 %1030
      %v1034 = vsel %vm441, %v880, %v993
      %v1037 = vsel %vm441, %v882, %v995
      %v1040 = vsel %vm441, %v884, %v997
      %v1043 = vsel %vm441, %v886, %v999
      %v1046 = vsel %vm441, %v888, %v1001
      %v1049 = vsel %vm441, %v890, %v1003
      %v1052 = vsel %vm441, %v892, %v1005
      %v1055 = vsel %vm441, %v894, %v1007
      %v1057 = vsel %vm466, %v1034, %v1017
      %v1059 = vsel %vm466, %v1037, %v1019
      %v1061 = vsel %vm466, %v1040, %v1021
      %v1063 = vsel %vm466, %v1043, %v1023
      %v1065 = vsel %vm466, %v1046, %v1025
      %v1067 = vsel %vm466, %v1049, %v1027
      %v1069 = vsel %vm466, %v1052, %v1029
      %v1071 = vsel %vm466, %v1055, %v1031
      %v1072 = vld [vmem:[#allocation2] sm:$0xff]
      %v1073 = vld [vmem:[#allocation2 + $0x8] sm:$0xff]
      %v1074 = vld [vmem:[#allocation2 + $0x10] sm:$0xff]
      %v1075 = vld [vmem:[#allocation2 + $0x18] sm:$0xff]
      %v1076 = vld [vmem:[#allocation2 + $0x20] sm:$0xff]
      %v1077 = vld [vmem:[#allocation2 + $0x28] sm:$0xff]
      %v1078 = vld [vmem:[#allocation2 + $0x30] sm:$0xff]
      %v1079 = vld [vmem:[#allocation2 + $0x38] sm:$0xff]
      %s1080 = scalar_lea.vmem %s265, 24
      %v1081 = vld [vmem:[%s1080] sm:$0xf]
      %v1082 = vld [vmem:[%s1080 + $0x4] sm:$0xf]
      %v1083 = vld [vmem:[%s1080 + $0x8] sm:$0xf]
      %v1092 = vunpack.c.l.b16 %v1057
      %v1093 = vunpack.c.l.b16 %v1059
      %v1094 = vunpack.c.l.b16 %v1061
      %v1095 = vunpack.c.l.b16 %v1063
      %v1096 = vunpack.c.l.b16 %v1065
      %v1097 = vunpack.c.l.b16 %v1067
      %v1098 = vunpack.c.l.b16 %v1069
      %v1099 = vunpack.c.l.b16 %v1071
      %v1100 = vpack.c.b16 %v1093, %v1092
      %v1101 = vpack.c.b16 %v1095, %v1094
      %v1102 = vpack.c.b16 %v1097, %v1096
      %v1103 = vpack.c.b16 %v1099, %v1098
      %v1107 = vunpack.c.l.b16 %v1081
      %v1108 = vunpack.c.l.b16 %v1082
      %v1109 = vunpack.c.l.b16 %v1083
      %v1110 = vpack.c.b16 %v1108, %v1107
      %v1111 = vpack.c.b16 %v1109, %v1109
      %v1114 = vsel %vm523, %v1100, 0
      %v1117 = vsel %vm523, %v1101, 0
      %v1120 = vsel %vm523, %v1102, 0
      %v1123 = vsel %vm523, %v1103, 0
      %v1126 = vsel %vm536, %v1111, 0
      %1128 = vmatpush.bf16.msra.mxu0 0
      %1129 = vmatpush.bf16.msra.mxu0 0
      %1130 = vmatpush.bf16.msra.mxu0 0
      %1131 = vmatpush.bf16.msra.mxu0 0
      %1132 = vmatpush.bf16.msra.mxu0 0
      %1133 = vmatpush.bf16.msra.mxu0 0
      %1134 = vmatpush.bf16.msra.mxu0 %v1126
      %1135 = vmatpush.bf16.msra.mxu0 %v1110
      %1136 = vmatmul.bf16.gmra.mxu0 %v1114
      %v1137 = vpop.f32.mrf.mxu0
      %v1138 = vadd.f32 0.0, %v1137
      %v1139 = vpop.f32.mrf.mxu0
      %v1140 = vadd.f32 0.0, %v1139
      %1141 = vmatmul.bf16.gmra.mxu0 %v1117
      %v1142 = vpop.f32.mrf.mxu0
      %v1143 = vadd.f32 0.0, %v1142
      %v1144 = vpop.f32.mrf.mxu0
      %v1145 = vadd.f32 0.0, %v1144
      %1146 = vmatmul.bf16.gmra.mxu0 %v1120
      %v1147 = vpop.f32.mrf.mxu0
      %v1148 = vadd.f32 0.0, %v1147
      %v1149 = vpop.f32.mrf.mxu0
      %v1150 = vadd.f32 0.0, %v1149
      %1151 = vmatmul.bf16.gmra.mxu0 %v1123
      %v1152 = vpop.f32.mrf.mxu0
      %v1153 = vadd.f32 0.0, %v1152
      %v1154 = vpop.f32.mrf.mxu0
      %v1155 = vadd.f32 0.0, %v1154
      %1156 = vdwg.mxu0
      %v1157 = vadd.f32 %v1072, %v1138
      %v1158 = vadd.f32 %v1073, %v1140
      %v1159 = vadd.f32 %v1074, %v1143
      %v1160 = vadd.f32 %v1075, %v1145
      %v1161 = vadd.f32 %v1076, %v1148
      %v1162 = vadd.f32 %v1077, %v1150
      %v1163 = vadd.f32 %v1078, %v1153
      %v1164 = vadd.f32 %v1079, %v1155
      %1165 = vst.msk [vmem:[#allocation2] sm:$0xff] %vm441, %v1157
      %1166 = vst.msk [vmem:[#allocation2 + $0x8] sm:$0xff] %vm441, %v1158
      %1167 = vst.msk [vmem:[#allocation2 + $0x10] sm:$0xff] %vm441, %v1159
      %1168 = vst.msk [vmem:[#allocation2 + $0x18] sm:$0xff] %vm441, %v1160
      %1169 = vst.msk [vmem:[#allocation2 + $0x20] sm:$0xff] %vm441, %v1161
      %1170 = vst.msk [vmem:[#allocation2 + $0x28] sm:$0xff] %vm441, %v1162
      %1171 = vst.msk [vmem:[#allocation2 + $0x30] sm:$0xff] %vm441, %v1163
      %1172 = vst.msk [vmem:[#allocation2 + $0x38] sm:$0xff] %vm441, %v1164
      %p1173 = scmp.eq.s32.totalorder %s22, 2
      // Predicated region
      $region41: #{basic_transformation_forward.2} parent=35 // pred_check
        %p1174 = pneg %p1173
      $region42: #{basic_transformation_forward.2} parent=35 // pred_check_branch
        %1176 = sbr.rel (%p1174) target = $region44
      $region43: #{basic_transformation_forward.2} parent=35 // pred_region
        %v1177 = vld [vmem:[#allocation2] sm:$0xff]
        %v1178 = vld [vmem:[#allocation2 + $0x8] sm:$0xff]
        %v1179 = vld [vmem:[#allocation2 + $0x10] sm:$0xff]
        %v1180 = vld [vmem:[#allocation2 + $0x18] sm:$0xff]
        %v1181 = vld [vmem:[#allocation2 + $0x20] sm:$0xff]
        %v1182 = vld [vmem:[#allocation2 + $0x28] sm:$0xff]
        %v1183 = vld [vmem:[#allocation2 + $0x30] sm:$0xff]
        %v1184 = vld [vmem:[#allocation2 + $0x38] sm:$0xff]
        %v1185 = vld [vmem:[%s2] sm:$0x1]
        %v1187 = vperm.slane %v1185, 0
        %v1189 = vmul.f32 %v1177, %v1187
        %v1190 = vmul.f32 %v1178, %v1187
        %v1191 = vmul.f32 %v1179, %v1187
        %v1192 = vmul.f32 %v1180, %v1187
        %v1193 = vmul.f32 %v1181, %v1187
        %v1194 = vmul.f32 %v1182, %v1187
        %v1195 = vmul.f32 %v1183, %v1187
        %v1196 = vmul.f32 %v1184, %v1187
        %v1197 = vld [vmem:[%s3] sm:$0x1]
        %v1199 = vperm.slane %v1197, 0
        %v1201 = vadd.f32 %v1189, %v1199
        %v1202 = vadd.f32 %v1190, %v1199
        %v1203 = vadd.f32 %v1191, %v1199
        %v1204 = vadd.f32 %v1192, %v1199
        %v1205 = vadd.f32 %v1193, %v1199
        %v1206 = vadd.f32 %v1194, %v1199
        %v1207 = vadd.f32 %v1195, %v1199
        %v1208 = vadd.f32 %v1196, %v1199
        %v1209 = vmax.f32 %v1201, 0.0
        %v1210 = vmax.f32 %v1202, 0.0
        %v1211 = vmax.f32 %v1203, 0.0
        %v1212 = vmax.f32 %v1204, 0.0
        %v1213 = vmax.f32 %v1205, 0.0
        %v1214 = vmax.f32 %v1206, 0.0
        %v1215 = vmax.f32 %v1207, 0.0
        %v1216 = vmax.f32 %v1208, 0.0
        %v1217 = vpack.c.bf16 %v1209, %v1209
        %v1218 = vpack.c.bf16 %v1210, %v1210
        %v1219 = vpack.c.bf16 %v1211, %v1211
        %v1220 = vpack.c.bf16 %v1212, %v1212
        %v1221 = vpack.c.bf16 %v1213, %v1213
        %v1222 = vpack.c.bf16 %v1214, %v1214
        %v1223 = vpack.c.bf16 %v1215, %v1215
        %v1224 = vpack.c.bf16 %v1216, %v1216
        %vm1225 = vcmask 60416
        %1226 = vst.msk [vmem:[%s274] sm:$0xf] %vm1225, %v1217
        %1227 = vst.msk [vmem:[%s274 + $0x4] sm:$0xf] %vm1225, %v1218
        %1228 = vst.msk [vmem:[%s274 + $0x8] sm:$0xf] %vm1225, %v1219
        %1229 = vst.msk [vmem:[%s274 + $0xc] sm:$0xf] %vm1225, %v1220
        %1230 = vst.msk [vmem:[%s274 + $0x10] sm:$0xf] %vm1225, %v1221
        %1231 = vst.msk [vmem:[%s274 + $0x14] sm:$0xf] %vm1225, %v1222
        %1232 = vst.msk [vmem:[%s274 + $0x18] sm:$0xf] %vm1225, %v1223
        %1233 = vst.msk [vmem:[%s274 + $0x1c] sm:$0xf] %vm1225, %v1224
      $region44: #{basic_transformation_forward.2} parent=35 // pred_fallthru
        _
      %p1234 = scmp.lt.s32.totalorder %s20, 1
      %s1235 = scalar_select %p1234, %s20, 1
      %p1236 = scmp.lt.s32.totalorder %s21, 1
      %s1237 = scalar_select %p1236, %s21, 1
      %s1238 = smul.addr %s1237, 8
      %s1239 = smul.addr %s1235, 16
      %s1240 = sadd.s32 %s1238, %s1239
      %s1241 = smul.addr %s1240, 4
      %s1242 = scalar_lea.vmem %s4, %s1241
      // Predicated region
      $region45: #{basic_transformation_forward.2} parent=35 // pred_check
        %p1243 = pneg %p154
      $region46: #{basic_transformation_forward.2} parent=35 // pred_check_branch
        %1245 = sbr.rel (%p1243) target = $region48
      $region47: #{basic_transformation_forward.2} parent=35 // pred_region
        _
      $region48: #{basic_transformation_forward.2} parent=35 // pred_fallthru
        _
    $region36: #{basic_transformation_forward.2} parent=5 // pred_fallthru
      _
    %p1246 = scmp.le.s32.totalorder 2, %s10
    // Predicated region
    $region49: #{basic_transformation_forward.2} parent=5 // pred_check
      %p1247 = pneg %p1246
    $region50: #{basic_transformation_forward.2} parent=5 // pred_check_branch
      %1249 = sbr.rel (%p1247) target = $region52
    $region51: #{basic_transformation_forward.2} parent=5 // pred_region
      %s1250 = ssub.s32 %s10, 2
      // Predicated region
      $region53: #{basic_transformation_forward.2} parent=51 // pred_check
        %p1251 = pneg %p160
      $region54: #{basic_transformation_forward.2} parent=51 // pred_check_branch
        %1253 = sbr.rel (%p1251) target = $region56
      $region55: #{basic_transformation_forward.2} parent=51 // pred_region
        %p1254 = scmp.lt.s32.totalorder %s23, 1
        %s1255 = scalar_select %p1254, %s23, 1
        %p1256 = scmp.lt.s32.totalorder %s24, 1
        %s1257 = scalar_select %p1256, %s24, 1
        %s1258 = smul.addr %s1257, 8
        %s1259 = smul.addr %s1255, 16
        %s1260 = sadd.s32 %s1258, %s1259
        %s1261 = smul.addr %s1260, 4
        %s1262 = scalar_lea.vmem %s4, %s1261
      $region56: #{basic_transformation_forward.2} parent=51 // pred_fallthru
        _
    $region52: #{basic_transformation_forward.2} parent=5 // pred_fallthru
      _
  $region6: #{basic_transformation_forward.2} parent=0 // loop_footer
    %s14 = sadd.s32 1, %s10
  $region7: #{basic_transformation_forward.2} parent=0 // loop_footer_branch
    %9 = sbr.rel target = $region3
  $region8: #{basic_transformation_forward.2} parent=0 // loop_exit
    _

// kernel: basic_transformation_forward.3
$region0: #{basic_transformation_forward.3}
  #allocation0 [shape = 'u32[]', space=smem, size = 0x4, offset = 0x4, fixed_abs, tag = 'smem constant byte address 0x4 - core index']
  #allocation1 [shape = 'u32[72,128]{1,0:T(1,128)}', space=vmem, size = 0x9000, scoped, tag = 'internal scratch']
  #allocation2 [shape = 'f32[64,8]{1,0:T(8,128)}', space=vmem, size = 0x8000, scoped, tag = 'scratch operand']
  %s0 = inlined_call_operand.vmem [shape: bf16[2,4,10,10,8], index: 0, kind: input, shape index: {}]
  %s1 = inlined_call_operand.vmem [shape: bf16[3,3,24,8], index: 1, kind: input, shape index: {}]
  %s2 = inlined_call_operand.vmem [shape: f32[1,8], index: 2, kind: input, shape index: {}]
  %s3 = inlined_call_operand.vmem [shape: f32[1,8], index: 3, kind: input, shape index: {}]
  %s4 = inlined_call_operand.vmem [shape: f32[2,2,8,8,8], index: 4, kind: output, shape index: {}]
  %s5 = sld [smem:[#allocation0]]
  $region57: #{basic_transformation_forward.3} parent=0
    _
  %s7 = ssub.s32 1, %s5
  %s8 = scalar_select 0, %s7, %s5
  loop: start=0, step=1, limit=14
  $region2: #{basic_transformation_forward.3} parent=0 // loop_pre_header
    _
  $region3: #{basic_transformation_forward.3} parent=0 // loop_header
    %s10 = sphi 0, %s14
    %p11 = scmp.ge.s32.totalorder %s10, 14
    %s17 = sphi 0, %s36
    %s18 = sphi 0, %s32
    %s19 = sphi 0, %s28
    %s20 = sphi 0, %s17
    %s21 = sphi 0, %s18
    %s22 = sphi 0, %s19
    %s23 = sphi 0, %s20
    %s24 = sphi 0, %s21
    %s25 = sphi 0, %s22
    %s43 = sphi 0, %s45
    %s46 = sphi 0, %s43
    %s47 = sphi 0, %s46
    %s63 = sphi 0, %s47
    %s69 = sphi 0, %s71
    %s72 = sphi 0, %s69
    %s73 = sphi 0, %s72
    %s89 = sphi 0, %s73
    %s93 = sphi 0, %s93
    %s95 = sphi 0, %s93
    %s96 = sphi 0, %s95
    %s110 = sphi 0, %s96
    %s114 = sphi 0, %s114
    %s116 = sphi 0, %s114
    %s117 = sphi 0, %s116
    %s131 = sphi 0, %s117
    %s139 = sphi 0, %s141
    %s142 = sphi 0, %s139
    %s143 = sphi 0, %s142
    %s159 = sphi 0, %s143
  $region4: #{basic_transformation_forward.3} parent=0 // loop_header_branch
    %13 = sbr.rel (%p11) target = $region8
  $region5: #{basic_transformation_forward.3} parent=0 // loop_body
    %s15 = ssub.s32 %s10, 1
    %s16 = ssub.s32 %s10, 2
    %s26 = sadd.s32 1, %s19
    %p27 = scmp.ge.s32.totalorder %s26, 3
    %s28 = scalar_select %p27, 0, %s26
    %s29 = sadd.s32 1, %s18
    %s30 = scalar_select %p27, %s29, %s18
    %p31 = scmp.ge.s32.totalorder %s30, 2
    %s32 = scalar_select %p31, 0, %s30
    %s33 = sadd.s32 1, %s17
    %s34 = scalar_select %p31, %s33, %s17
    %p35 = scmp.ge.s32.totalorder %s34, 2
    %s36 = scalar_select %p35, 0, %s34
    %s37 = sadd.s32 %s18, %s19
    %s38 = sadd.s32 %s32, %s28
    %s39 = ssub.s32 %s17, %s36
    %s40 = ssub.s32 %s37, %s38
    %s41 = sor.u32 %s39, %s40
    %p42 = scmp.eq.s32.totalorder %s41, 0
    %s44 = sadd.s32 %s43, 1
    %s45 = scalar_select %p42, %s43, %s44
    %p48 = pneg %p42
    %p49 = scmp.eq.s32.totalorder %s10, 11
    %p50 = por %p48, %p49
    %p51 = scmp.ne.s32.totalorder %s43, %s46
    %p52 = scmp.eq.s32.totalorder %s10, 0
    %p53 = por %p51, %p52
    %p54 = scmp.ne.s32.totalorder %s43, %s46
    %p55 = scmp.eq.s32.totalorder %s15, 11
    %p56 = por %p54, %p55
    %p57 = scmp.ne.s32.totalorder %s46, %s47
    %p58 = scmp.eq.s32.totalorder %s15, 0
    %p59 = por %p57, %p58
    %p60 = scmp.ne.s32.totalorder %s46, %s47
    %p61 = scmp.eq.s32.totalorder %s16, 11
    %p62 = por %p60, %p61
    %p64 = scmp.ne.s32.totalorder %s47, %s63
    %p65 = scmp.eq.s32.totalorder %s16, 0
    %p66 = por %p64, %p65
    %s67 = ssub.s32 %s19, %s28
    %p68 = scmp.eq.s32.totalorder %s67, 0
    %s70 = sadd.s32 %s69, 1
    %s71 = scalar_select %p68, %s69, %s70
    %p74 = pneg %p68
    %p75 = scmp.eq.s32.totalorder %s10, 11
    %p76 = por %p74, %p75
    %p77 = scmp.ne.s32.totalorder %s69, %s72
    %p78 = scmp.eq.s32.totalorder %s10, 0
    %p79 = por %p77, %p78
    %p80 = scmp.ne.s32.totalorder %s69, %s72
    %p81 = scmp.eq.s32.totalorder %s15, 11
    %p82 = por %p80, %p81
    %p83 = scmp.ne.s32.totalorder %s72, %s73
    %p84 = scmp.eq.s32.totalorder %s15, 0
    %p85 = por %p83, %p84
    %p86 = scmp.ne.s32.totalorder %s72, %s73
    %p87 = scmp.eq.s32.totalorder %s16, 11
    %p88 = por %p86, %p87
    %p90 = scmp.ne.s32.totalorder %s73, %s89
    %p91 = scmp.eq.s32.totalorder %s16, 0
    %p92 = por %p90, %p91
    %s94 = sadd.s32 %s93, 1
    %p97 = scmp.eq.s32.totalorder %s10, 11
    %p98 = scmp.ne.s32.totalorder %s93, %s95
    %p99 = scmp.eq.s32.totalorder %s10, 0
    %p100 = por %p98, %p99
    %p101 = scmp.ne.s32.totalorder %s93, %s95
    %p102 = scmp.eq.s32.totalorder %s15, 11
    %p103 = por %p101, %p102
    %p104 = scmp.ne.s32.totalorder %s95, %s96
    %p105 = scmp.eq.s32.totalorder %s15, 0
    %p106 = por %p104, %p105
    %p107 = scmp.ne.s32.totalorder %s95, %s96
    %p108 = scmp.eq.s32.totalorder %s16, 11
    %p109 = por %p107, %p108
    %p111 = scmp.ne.s32.totalorder %s96, %s110
    %p112 = scmp.eq.s32.totalorder %s16, 0
    %p113 = por %p111, %p112
    %s115 = sadd.s32 %s114, 1
    %p118 = scmp.eq.s32.totalorder %s10, 11
    %p119 = scmp.ne.s32.totalorder %s114, %s116
    %p120 = scmp.eq.s32.totalorder %s10, 0
    %p121 = por %p119, %p120
    %p122 = scmp.ne.s32.totalorder %s114, %s116
    %p123 = scmp.eq.s32.totalorder %s15, 11
    %p124 = por %p122, %p123
    %p125 = scmp.ne.s32.totalorder %s116, %s117
    %p126 = scmp.eq.s32.totalorder %s15, 0
    %p127 = por %p125, %p126
    %p128 = scmp.ne.s32.totalorder %s116, %s117
    %p129 = scmp.eq.s32.totalorder %s16, 11
    %p130 = por %p128, %p129
    %p132 = scmp.ne.s32.totalorder %s117, %s131
    %p133 = scmp.eq.s32.totalorder %s16, 0
    %p134 = por %p132, %p133
    %s135 = ssub.s32 %s17, %s36
    %s136 = ssub.s32 %s18, %s32
    %s137 = sor.u32 %s135, %s136
    %p138 = scmp.eq.s32.totalorder %s137, 0
    %s140 = sadd.s32 %s139, 1
    %s141 = scalar_select %p138, %s139, %s140
    %p144 = pneg %p138
    %p145 = scmp.eq.s32.totalorder %s10, 11
    %p146 = por %p144, %p145
    %p147 = scmp.ne.s32.totalorder %s139, %s142
    %p148 = scmp.eq.s32.totalorder %s10, 0
    %p149 = por %p147, %p148
    %p150 = scmp.ne.s32.totalorder %s139, %s142
    %p151 = scmp.eq.s32.totalorder %s15, 11
    %p152 = por %p150, %p151
    %p153 = scmp.ne.s32.totalorder %s142, %s143
    %p154 = scmp.eq.s32.totalorder %s15, 0
    %p155 = por %p153, %p154
    %p156 = scmp.ne.s32.totalorder %s142, %s143
    %p157 = scmp.eq.s32.totalorder %s16, 11
    %p158 = por %p156, %p157
    %p160 = scmp.ne.s32.totalorder %s143, %s159
    %p161 = scmp.eq.s32.totalorder %s16, 0
    %p162 = por %p160, %p161
    %p163 = scmp.le.s32.totalorder 1, %s10
    %p164 = scmp.lt.s32.totalorder %s10, 13
    %p165 = pnand %p163, %p164
    %p166 = pneg %p165
    // Predicated region
    $region9: #{basic_transformation_forward.3} parent=5 // pred_check
      _
    $region10: #{basic_transformation_forward.3} parent=5 // pred_check_branch
      %168 = sbr.rel (%p165) target = $region12
    $region11: #{basic_transformation_forward.3} parent=5 // pred_region
      %s169 = ssub.s32 %s10, 1
      // Predicated region
      $region13: #{basic_transformation_forward.3} parent=11 // pred_check
        %p170 = pneg %p106
      $region14: #{basic_transformation_forward.3} parent=11 // pred_check_branch
        %172 = sbr.rel (%p170) target = $region16
      $region15: #{basic_transformation_forward.3} parent=11 // pred_region
        _
      $region16: #{basic_transformation_forward.3} parent=11 // pred_fallthru
        _
      // Predicated region
      $region17: #{basic_transformation_forward.3} parent=11 // pred_check
        %p173 = pneg %p127
      $region18: #{basic_transformation_forward.3} parent=11 // pred_check_branch
        %175 = sbr.rel (%p173) target = $region20
      $region19: #{basic_transformation_forward.3} parent=11 // pred_region
        _
      $region20: #{basic_transformation_forward.3} parent=11 // pred_fallthru
        _
    $region12: #{basic_transformation_forward.3} parent=5 // pred_fallthru
      _
    %p176 = scmp.lt.s32.totalorder %s10, 12
    // Predicated region
    $region21: #{basic_transformation_forward.3} parent=5 // pred_check
      %p177 = pneg %p176
    $region22: #{basic_transformation_forward.3} parent=5 // pred_check_branch
      %179 = sbr.rel (%p177) target = $region24
    $region23: #{basic_transformation_forward.3} parent=5 // pred_region
      // Predicated region
      $region25: #{basic_transformation_forward.3} parent=23 // pred_check
        %p180 = pneg %p53
      $region26: #{basic_transformation_forward.3} parent=23 // pred_check_branch
        %182 = sbr.rel (%p180) target = $region28
      $region27: #{basic_transformation_forward.3} parent=23 // pred_region
        %s183 = sadd.s32 %s18, %s19
        %p184 = scmp.lt.s32.totalorder %s17, 1
        %s185 = scalar_select %p184, %s17, 1
        %p186 = scmp.lt.s32.totalorder %s183, 3
        %s187 = scalar_select %p186, %s183, 3
        %s188 = smul.addr %s187, 20
        %s189 = smul.addr %s185, 80
        %s190 = sadd.s32 %s188, %s189
        %s191 = smul.addr %s190, 4
        %s192 = scalar_lea.vmem %s0, %s191
        %s193 = sadd.s32 %s18, %s19
      $region28: #{basic_transformation_forward.3} parent=23 // pred_fallthru
        _
      // Predicated region
      $region29: #{basic_transformation_forward.3} parent=23 // pred_check
        %p194 = pneg %p79
      $region30: #{basic_transformation_forward.3} parent=23 // pred_check_branch
        %196 = sbr.rel (%p194) target = $region32
      $region31: #{basic_transformation_forward.3} parent=23 // pred_region
        %p197 = scmp.lt.s32.totalorder %s19, 2
        %s198 = scalar_select %p197, %s19, 2
        %s199 = smul.addr %s198, 9
        %s200 = smul.addr %s199, 4
        %s201 = scalar_lea.vmem %s1, %s200
      $region32: #{basic_transformation_forward.3} parent=23 // pred_fallthru
        _
    $region24: #{basic_transformation_forward.3} parent=5 // pred_fallthru
      _
    %p202 = scmp.le.s32.totalorder 1, %s10
    %p203 = scmp.lt.s32.totalorder %s10, 13
    %p204 = pnand %p202, %p203
    %p205 = pneg %p204
    // Predicated region
    $region33: #{basic_transformation_forward.3} parent=5 // pred_check
      _
    $region34: #{basic_transformation_forward.3} parent=5 // pred_check_branch
      %207 = sbr.rel (%p204) target = $region36
    $region35: #{basic_transformation_forward.3} parent=5 // pred_region
      %s208 = ssub.s32 %s10, 1
      %s209 = sadd.s32 %s21, %s22
      %p210 = scmp.lt.s32.totalorder %s20, 1
      %s211 = scalar_select %p210, %s20, 1
      %p212 = scmp.lt.s32.totalorder %s209, 3
      %s213 = scalar_select %p212, %s209, 3
      %s214 = smul.addr %s213, 20
      %s215 = smul.addr %s211, 80
      %s216 = sadd.s32 %s214, %s215
      %s217 = smul.addr %s216, 4
      %s218 = scalar_lea.vmem %s0, %s217
      %p219 = pneg %p59
      %p220 = pneg %p56
      %p221 = scmp.lt.s32.totalorder %s22, 2
      %s222 = scalar_select %p221, %s22, 2
      %s223 = smul.addr %s222, 9
      %s224 = smul.addr %s223, 4
      %s225 = scalar_lea.vmem %s1, %s224
      %p226 = pneg %p85
      %p227 = pneg %p82
      %p228 = pneg %p106
      %p229 = pneg %p103
      %p230 = pneg %p127
      %p231 = pneg %p124
      %p232 = pneg %p155
      %p233 = pneg %p152
      %p234 = scmp.lt.s32.totalorder %s20, 1
      %s235 = scalar_select %p234, %s20, 1
      %p236 = scmp.lt.s32.totalorder %s21, 1
      %s237 = scalar_select %p236, %s21, 1
      %s238 = smul.addr %s237, 8
      %s239 = smul.addr %s235, 16
      %s240 = sadd.s32 %s238, %s239
      %s241 = smul.addr %s240, 8
      %s242 = scalar_lea.vmem %s4, %s241
      %s243 = sadd.s32 %s21, %s22
      %p244 = scmp.lt.s32.totalorder %s20, 1
      %s245 = scalar_select %p244, %s20, 1
      %p246 = scmp.lt.s32.totalorder %s243, 3
      %s247 = scalar_select %p246, %s243, 3
      %s248 = smul.addr %s247, 20
      %s249 = smul.addr %s245, 80
      %s250 = sadd.s32 %s248, %s249
      %s251 = smul.addr %s250, 4
      %s252 = scalar_lea.vmem %s0, %s251
      %s253 = sadd.s32 %s21, %s22
      %p254 = scmp.lt.s32.totalorder %s22, 2
      %s255 = scalar_select %p254, %s22, 2
      %s256 = smul.addr %s255, 9
      %s257 = smul.addr %s256, 4
      %s258 = scalar_lea.vmem %s1, %s257
      %p259 = scmp.lt.s32.totalorder %s20, 1
      %s260 = scalar_select %p259, %s20, 1
      %p261 = scmp.lt.s32.totalorder %s21, 1
      %s262 = scalar_select %p261, %s21, 1
      %s263 = smul.addr %s262, 8
      %s264 = smul.addr %s260, 16
      %s265 = sadd.s32 %s263, %s264
      %s266 = smul.addr %s265, 8
      %s267 = scalar_lea.vmem %s4, %s266
      %p269 = scmp.eq.s32.totalorder %s22, 0
      // Predicated region
      $region37: #{basic_transformation_forward.3} parent=35 // pred_check
        %p270 = pneg %p269
      $region38: #{basic_transformation_forward.3} parent=35 // pred_check_branch
        %272 = sbr.rel (%p270) target = $region40
      $region39: #{basic_transformation_forward.3} parent=35 // pred_region
        %vm273 = vcmask 64512
        %274 = vst.msk [vmem:[#allocation2] sm:$0xff] %vm273, 0.0
        %275 = vst.msk [vmem:[#allocation2 + $0x8] sm:$0xff] %vm273, 0.0
        %276 = vst.msk [vmem:[#allocation2 + $0x10] sm:$0xff] %vm273, 0.0
        %277 = vst.msk [vmem:[#allocation2 + $0x18] sm:$0xff] %vm273, 0.0
        %278 = vst.msk [vmem:[#allocation2 + $0x20] sm:$0xff] %vm273, 0.0
        %279 = vst.msk [vmem:[#allocation2 + $0x28] sm:$0xff] %vm273, 0.0
        %280 = vst.msk [vmem:[#allocation2 + $0x30] sm:$0xff] %vm273, 0.0
        %281 = vst.msk [vmem:[#allocation2 + $0x38] sm:$0xff] %vm273, 0.0
      $region40: #{basic_transformation_forward.3} parent=35 // pred_fallthru
        _
      %v282 = vld [vmem:[%s252] sm:$0xf]
      %v283 = vld [vmem:[%s252 + $0x4] sm:$0x1]
      %v284 = vld [vmem:[%s252 + $0x8] sm:$0xf]
      %v285 = vld [vmem:[%s252 + $0xc] sm:$0x1]
      %v286 = vld [vmem:[%s252 + $0x10] sm:$0xf]
      %v287 = vld [vmem:[%s252 + $0x14] sm:$0x1]
      %v288 = vld [vmem:[%s252 + $0x18] sm:$0xf]
      %v289 = vld [vmem:[%s252 + $0x1c] sm:$0x1]
      %v290 = vld [vmem:[%s252 + $0x20] sm:$0xf]
      %v291 = vld [vmem:[%s252 + $0x24] sm:$0x1]
      %v292 = vld [vmem:[%s252 + $0x28] sm:$0xf]
      %v293 = vld [vmem:[%s252 + $0x2c] sm:$0x1]
      %v294 = vld [vmem:[%s252 + $0x30] sm:$0xf]
      %v295 = vld [vmem:[%s252 + $0x34] sm:$0x1]
      %v296 = vld [vmem:[%s252 + $0x38] sm:$0xf]
      %v297 = vld [vmem:[%s252 + $0x3c] sm:$0x1]
      %v314 = vunpack.c.l.b16 %v282
      %v315 = vunpack.c.l.b16 %v283
      %v316 = vunpack.c.l.b16 %v284
      %v317 = vunpack.c.l.b16 %v285
      %v318 = vunpack.c.l.b16 %v286
      %v319 = vunpack.c.l.b16 %v287
      %v320 = vunpack.c.l.b16 %v288
      %v321 = vunpack.c.l.b16 %v289
      %v322 = vunpack.c.l.b16 %v290
      %v323 = vunpack.c.l.b16 %v291
      %v324 = vunpack.c.l.b16 %v292
      %v325 = vunpack.c.l.b16 %v293
      %v326 = vunpack.c.l.b16 %v294
      %v327 = vunpack.c.l.b16 %v295
      %v328 = vunpack.c.l.b16 %v296
      %v329 = vunpack.c.l.b16 %v297
      %v330 = vpack.c.b16 %v315, %v314
      %v331 = vpack.c.b16 %v317, %v316
      %v332 = vpack.c.b16 %v319, %v318
      %v333 = vpack.c.b16 %v321, %v320
      %v334 = vpack.c.b16 %v323, %v322
      %v335 = vpack.c.b16 %v325, %v324
      %v336 = vpack.c.b16 %v327, %v326
      %v337 = vpack.c.b16 %v329, %v328
      %v339 = vshrl.u32 %v330, 16
      %v341 = vshll.u32 %v330, 16
      %v343 = vrot.slane %v341, 1
      %v344 = vor.u32 %v339, %v343
      %v346 = vshrl.u32 %v331, 16
      %v348 = vshll.u32 %v331, 16
      %v350 = vrot.slane %v348, 1
      %v351 = vor.u32 %v346, %v350
      %v353 = vshrl.u32 %v332, 16
      %v355 = vshll.u32 %v332, 16
      %v357 = vrot.slane %v355, 1
      %v358 = vor.u32 %v353, %v357
      %v360 = vshrl.u32 %v333, 16
      %v362 = vshll.u32 %v333, 16
      %v364 = vrot.slane %v362, 1
      %v365 = vor.u32 %v360, %v364
      %v367 = vshrl.u32 %v334, 16
      %v369 = vshll.u32 %v334, 16
      %v371 = vrot.slane %v369, 1
      %v372 = vor.u32 %v367, %v371
      %v374 = vshrl.u32 %v335, 16
      %v376 = vshll.u32 %v335, 16
      %v378 = vrot.slane %v376, 1
      %v379 = vor.u32 %v374, %v378
      %v381 = vshrl.u32 %v336, 16
      %v383 = vshll.u32 %v336, 16
      %v385 = vrot.slane %v383, 1
      %v386 = vor.u32 %v381, %v385
      %v388 = vshrl.u32 %v337, 16
      %v390 = vshll.u32 %v337, 16
      %v392 = vrot.slane %v390, 1
      %v393 = vor.u32 %v388, %v392
      %394 = vrot.lane.b32.xlu0 %v344, 8
      %v395 = vpop.permute.xlu0 %394
      %396 = vrot.lane.b32.xlu0 %v351, 8
      %v397 = vpop.permute.xlu0 %396
      %398 = vrot.lane.b32.xlu0 %v358, 8
      %v399 = vpop.permute.xlu0 %398
      %400 = vrot.lane.b32.xlu0 %v365, 8
      %v401 = vpop.permute.xlu0 %400
      %402 = vrot.lane.b32.xlu0 %v372, 8
      %v403 = vpop.permute.xlu0 %402
      %404 = vrot.lane.b32.xlu0 %v379, 8
      %v405 = vpop.permute.xlu0 %404
      %406 = vrot.lane.b32.xlu0 %v386, 8
      %v407 = vpop.permute.xlu0 %406
      %408 = vrot.lane.b32.xlu0 %v393, 8
      %v409 = vpop.permute.xlu0 %408
      %v410 = vrot.slane %v330, 1
      %v411 = vrot.slane %v331, 1
      %v412 = vrot.slane %v332, 1
      %v413 = vrot.slane %v333, 1
      %v414 = vrot.slane %v334, 1
      %v415 = vrot.slane %v335, 1
      %v416 = vrot.slane %v336, 1
      %v417 = vrot.slane %v337, 1
      %418 = vrot.lane.b32.xlu0 %v410, 16
      %v419 = vpop.permute.xlu0 %418
      %420 = vrot.lane.b32.xlu0 %v411, 16
      %v421 = vpop.permute.xlu0 %420
      %422 = vrot.lane.b32.xlu0 %v412, 16
      %v423 = vpop.permute.xlu0 %422
      %424 = vrot.lane.b32.xlu0 %v413, 16
      %v425 = vpop.permute.xlu0 %424
      %426 = vrot.lane.b32.xlu0 %v414, 16
      %v427 = vpop.permute.xlu0 %426
      %428 = vrot.lane.b32.xlu0 %v415, 16
      %v429 = vpop.permute.xlu0 %428
      %430 = vrot.lane.b32.xlu0 %v416, 16
      %v431 = vpop.permute.xlu0 %430
      %432 = vrot.lane.b32.xlu0 %v417, 16
      %v433 = vpop.permute.xlu0 %432
      %vm434 = vcmask 64512
      %v437 = vsel %vm434, %v282, %v395
      %v440 = vsel %vm434, %v284, %v397
      %v443 = vsel %vm434, %v286, %v399
      %v446 = vsel %vm434, %v288, %v401
      %v449 = vsel %vm434, %v290, %v403
      %v452 = vsel %vm434, %v292, %v405
      %v455 = vsel %vm434, %v294, %v407
      %v458 = vsel %vm434, %v296, %v409
      %vm459 = vcmask 130048
      %v461 = vsel %vm459, %v437, %v419
      %v463 = vsel %vm459, %v440, %v421
      %v465 = vsel %vm459, %v443, %v423
      %v467 = vsel %vm459, %v446, %v425
      %v469 = vsel %vm459, %v449, %v427
      %v471 = vsel %vm459, %v452, %v429
      %v473 = vsel %vm459, %v455, %v431
      %v475 = vsel %vm459, %v458, %v433
      %v476 = vld [vmem:[#allocation2] sm:$0xff]
      %v477 = vld [vmem:[#allocation2 + $0x8] sm:$0xff]
      %v478 = vld [vmem:[#allocation2 + $0x10] sm:$0xff]
      %v479 = vld [vmem:[#allocation2 + $0x18] sm:$0xff]
      %v480 = vld [vmem:[#allocation2 + $0x20] sm:$0xff]
      %v481 = vld [vmem:[#allocation2 + $0x28] sm:$0xff]
      %v482 = vld [vmem:[#allocation2 + $0x30] sm:$0xff]
      %v483 = vld [vmem:[#allocation2 + $0x38] sm:$0xff]
      %v484 = vld [vmem:[%s258] sm:$0xf]
      %v485 = vld [vmem:[%s258 + $0x4] sm:$0xf]
      %v486 = vld [vmem:[%s258 + $0x8] sm:$0xf]
      %v495 = vunpack.c.l.b16 %v461
      %v496 = vunpack.c.l.b16 %v463
      %v497 = vunpack.c.l.b16 %v465
      %v498 = vunpack.c.l.b16 %v467
      %v499 = vunpack.c.l.b16 %v469
      %v500 = vunpack.c.l.b16 %v471
      %v501 = vunpack.c.l.b16 %v473
      %v502 = vunpack.c.l.b16 %v475
      %v503 = vpack.c.b16 %v496, %v495
      %v504 = vpack.c.b16 %v498, %v497
      %v505 = vpack.c.b16 %v500, %v499
      %v506 = vpack.c.b16 %v502, %v501
      %v510 = vunpack.c.l.b16 %v484
      %v511 = vunpack.c.l.b16 %v485
      %v512 = vunpack.c.l.b16 %v486
      %v513 = vpack.c.b16 %v511, %v510
      %v514 = vpack.c.b16 %v512, %v512
      %vm516 = vcmask 195584
      %v518 = vsel %vm516, %v503, 0
      %v521 = vsel %vm516, %v504, 0
      %v524 = vsel %vm516, %v505, 0
      %v527 = vsel %vm516, %v506, 0
      %vm529 = vcmask 1043456
      %v531 = vsel %vm529, %v514, 0
      %533 = vmatpush.bf16.msra.mxu0 0
      %534 = vmatpush.bf16.msra.mxu0 0
      %535 = vmatpush.bf16.msra.mxu0 0
      %536 = vmatpush.bf16.msra.mxu0 0
      %537 = vmatpush.bf16.msra.mxu0 0
      %538 = vmatpush.bf16.msra.mxu0 0
      %539 = vmatpush.bf16.msra.mxu0 %v531
      %540 = vmatpush.bf16.msra.mxu0 %v513
      %541 = vmatmul.bf16.gmra.mxu0 %v518
      %v542 = vpop.f32.mrf.mxu0
      %v543 = vadd.f32 0.0, %v542
      %v544 = vpop.f32.mrf.mxu0
      %v545 = vadd.f32 0.0, %v544
      %546 = vmatmul.bf16.gmra.mxu0 %v521
      %v547 = vpop.f32.mrf.mxu0
      %v548 = vadd.f32 0.0, %v547
      %v549 = vpop.f32.mrf.mxu0
      %v550 = vadd.f32 0.0, %v549
      %551 = vmatmul.bf16.gmra.mxu0 %v524
      %v552 = vpop.f32.mrf.mxu0
      %v553 = vadd.f32 0.0, %v552
      %v554 = vpop.f32.mrf.mxu0
      %v555 = vadd.f32 0.0, %v554
      %556 = vmatmul.bf16.gmra.mxu0 %v527
      %v557 = vpop.f32.mrf.mxu0
      %v558 = vadd.f32 0.0, %v557
      %v559 = vpop.f32.mrf.mxu0
      %v560 = vadd.f32 0.0, %v559
      %561 = vdwg.mxu0
      %v562 = vadd.f32 %v476, %v543
      %v563 = vadd.f32 %v477, %v545
      %v564 = vadd.f32 %v478, %v548
      %v565 = vadd.f32 %v479, %v550
      %v566 = vadd.f32 %v480, %v553
      %v567 = vadd.f32 %v481, %v555
      %v568 = vadd.f32 %v482, %v558
      %v569 = vadd.f32 %v483, %v560
      %570 = vst.msk [vmem:[#allocation2] sm:$0xff] %vm434, %v562
      %571 = vst.msk [vmem:[#allocation2 + $0x8] sm:$0xff] %vm434, %v563
      %572 = vst.msk [vmem:[#allocation2 + $0x10] sm:$0xff] %vm434, %v564
      %573 = vst.msk [vmem:[#allocation2 + $0x18] sm:$0xff] %vm434, %v565
      %574 = vst.msk [vmem:[#allocation2 + $0x20] sm:$0xff] %vm434, %v566
      %575 = vst.msk [vmem:[#allocation2 + $0x28] sm:$0xff] %vm434, %v567
      %576 = vst.msk [vmem:[#allocation2 + $0x30] sm:$0xff] %vm434, %v568
      %577 = vst.msk [vmem:[#allocation2 + $0x38] sm:$0xff] %vm434, %v569
      %s578 = scalar_lea.vmem %s252, 8
      %v579 = vld [vmem:[%s578] sm:$0xf]
      %v580 = vld [vmem:[%s578 + $0x4] sm:$0x1]
      %v581 = vld [vmem:[%s578 + $0x8] sm:$0xf]
      %v582 = vld [vmem:[%s578 + $0xc] sm:$0x1]
      %v583 = vld [vmem:[%s578 + $0x10] sm:$0xf]
      %v584 = vld [vmem:[%s578 + $0x14] sm:$0x1]
      %v585 = vld [vmem:[%s578 + $0x18] sm:$0xf]
      %v586 = vld [vmem:[%s578 + $0x1c] sm:$0x1]
      %v587 = vld [vmem:[%s578 + $0x20] sm:$0xf]
      %v588 = vld [vmem:[%s578 + $0x24] sm:$0x1]
      %v589 = vld [vmem:[%s578 + $0x28] sm:$0xf]
      %v590 = vld [vmem:[%s578 + $0x2c] sm:$0x1]
      %v591 = vld [vmem:[%s578 + $0x30] sm:$0xf]
      %v592 = vld [vmem:[%s578 + $0x34] sm:$0x1]
      %v593 = vld [vmem:[%s578 + $0x38] sm:$0xf]
      %v594 = vld [vmem:[%s578 + $0x3c] sm:$0x1]
      %v611 = vunpack.c.l.b16 %v579
      %v612 = vunpack.c.l.b16 %v580
      %v613 = vunpack.c.l.b16 %v581
      %v614 = vunpack.c.l.b16 %v582
      %v615 = vunpack.c.l.b16 %v583
      %v616 = vunpack.c.l.b16 %v584
      %v617 = vunpack.c.l.b16 %v585
      %v618 = vunpack.c.l.b16 %v586
      %v619 = vunpack.c.l.b16 %v587
      %v620 = vunpack.c.l.b16 %v588
      %v621 = vunpack.c.l.b16 %v589
      %v622 = vunpack.c.l.b16 %v590
      %v623 = vunpack.c.l.b16 %v591
      %v624 = vunpack.c.l.b16 %v592
      %v625 = vunpack.c.l.b16 %v593
      %v626 = vunpack.c.l.b16 %v594
      %v627 = vpack.c.b16 %v612, %v611
      %v628 = vpack.c.b16 %v614, %v613
      %v629 = vpack.c.b16 %v616, %v615
      %v630 = vpack.c.b16 %v618, %v617
      %v631 = vpack.c.b16 %v620, %v619
      %v632 = vpack.c.b16 %v622, %v621
      %v633 = vpack.c.b16 %v624, %v623
      %v634 = vpack.c.b16 %v626, %v625
      %v636 = vshrl.u32 %v627, 16
      %v638 = vshll.u32 %v627, 16
      %v640 = vrot.slane %v638, 1
      %v641 = vor.u32 %v636, %v640
      %v643 = vshrl.u32 %v628, 16
      %v645 = vshll.u32 %v628, 16
      %v647 = vrot.slane %v645, 1
      %v648 = vor.u32 %v643, %v647
      %v650 = vshrl.u32 %v629, 16
      %v652 = vshll.u32 %v629, 16
      %v654 = vrot.slane %v652, 1
      %v655 = vor.u32 %v650, %v654
      %v657 = vshrl.u32 %v630, 16
      %v659 = vshll.u32 %v630, 16
      %v661 = vrot.slane %v659, 1
      %v662 = vor.u32 %v657, %v661
      %v664 = vshrl.u32 %v631, 16
      %v666 = vshll.u32 %v631, 16
      %v668 = vrot.slane %v666, 1
      %v669 = vor.u32 %v664, %v668
      %v671 = vshrl.u32 %v632, 16
      %v673 = vshll.u32 %v632, 16
      %v675 = vrot.slane %v673, 1
      %v676 = vor.u32 %v671, %v675
      %v678 = vshrl.u32 %v633, 16
      %v680 = vshll.u32 %v633, 16
      %v682 = vrot.slane %v680, 1
      %v683 = vor.u32 %v678, %v682
      %v685 = vshrl.u32 %v634, 16
      %v687 = vshll.u32 %v634, 16
      %v689 = vrot.slane %v687, 1
      %v690 = vor.u32 %v685, %v689
      %691 = vrot.lane.b32.xlu0 %v641, 8
      %v692 = vpop.permute.xlu0 %691
      %693 = vrot.lane.b32.xlu0 %v648, 8
      %v694 = vpop.permute.xlu0 %693
      %695 = vrot.lane.b32.xlu0 %v655, 8
      %v696 = vpop.permute.xlu0 %695
      %697 = vrot.lane.b32.xlu0 %v662, 8
      %v698 = vpop.permute.xlu0 %697
      %699 = vrot.lane.b32.xlu0 %v669, 8
      %v700 = vpop.permute.xlu0 %699
      %701 = vrot.lane.b32.xlu0 %v676, 8
      %v702 = vpop.permute.xlu0 %701
      %703 = vrot.lane.b32.xlu0 %v683, 8
      %v704 = vpop.permute.xlu0 %703
      %705 = vrot.lane.b32.xlu0 %v690, 8
      %v706 = vpop.permute.xlu0 %705
      %v707 = vrot.slane %v627, 1
      %v708 = vrot.slane %v628, 1
      %v709 = vrot.slane %v629, 1
      %v710 = vrot.slane %v630, 1
      %v711 = vrot.slane %v631, 1
      %v712 = vrot.slane %v632, 1
      %v713 = vrot.slane %v633, 1
      %v714 = vrot.slane %v634, 1
      %715 = vrot.lane.b32.xlu0 %v707, 16
      %v716 = vpop.permute.xlu0 %715
      %717 = vrot.lane.b32.xlu0 %v708, 16
      %v718 = vpop.permute.xlu0 %717
      %719 = vrot.lane.b32.xlu0 %v709, 16
      %v720 = vpop.permute.xlu0 %719
      %721 = vrot.lane.b32.xlu0 %v710, 16
      %v722 = vpop.permute.xlu0 %721
      %723 = vrot.lane.b32.xlu0 %v711, 16
      %v724 = vpop.permute.xlu0 %723
      %725 = vrot.lane.b32.xlu0 %v712, 16
      %v726 = vpop.permute.xlu0 %725
      %727 = vrot.lane.b32.xlu0 %v713, 16
      %v728 = vpop.permute.xlu0 %727
      %729 = vrot.lane.b32.xlu0 %v714, 16
      %v730 = vpop.permute.xlu0 %729
      %v733 = vsel %vm434, %v579, %v692
      %v736 = vsel %vm434, %v581, %v694
      %v739 = vsel %vm434, %v583, %v696
      %v742 = vsel %vm434, %v585, %v698
      %v745 = vsel %vm434, %v587, %v700
      %v748 = vsel %vm434, %v589, %v702
      %v751 = vsel %vm434, %v591, %v704
      %v754 = vsel %vm434, %v593, %v706
      %v756 = vsel %vm459, %v733, %v716
      %v758 = vsel %vm459, %v736, %v718
      %v760 = vsel %vm459, %v739, %v720
      %v762 = vsel %vm459, %v742, %v722
      %v764 = vsel %vm459, %v745, %v724
      %v766 = vsel %vm459, %v748, %v726
      %v768 = vsel %vm459, %v751, %v728
      %v770 = vsel %vm459, %v754, %v730
      %v771 = vld [vmem:[#allocation2] sm:$0xff]
      %v772 = vld [vmem:[#allocation2 + $0x8] sm:$0xff]
      %v773 = vld [vmem:[#allocation2 + $0x10] sm:$0xff]
      %v774 = vld [vmem:[#allocation2 + $0x18] sm:$0xff]
      %v775 = vld [vmem:[#allocation2 + $0x20] sm:$0xff]
      %v776 = vld [vmem:[#allocation2 + $0x28] sm:$0xff]
      %v777 = vld [vmem:[#allocation2 + $0x30] sm:$0xff]
      %v778 = vld [vmem:[#allocation2 + $0x38] sm:$0xff]
      %s779 = scalar_lea.vmem %s258, 12
      %v780 = vld [vmem:[%s779] sm:$0xf]
      %v781 = vld [vmem:[%s779 + $0x4] sm:$0xf]
      %v782 = vld [vmem:[%s779 + $0x8] sm:$0xf]
      %v791 = vunpack.c.l.b16 %v756
      %v792 = vunpack.c.l.b16 %v758
      %v793 = vunpack.c.l.b16 %v760
      %v794 = vunpack.c.l.b16 %v762
      %v795 = vunpack.c.l.b16 %v764
      %v796 = vunpack.c.l.b16 %v766
      %v797 = vunpack.c.l.b16 %v768
      %v798 = vunpack.c.l.b16 %v770
      %v799 = vpack.c.b16 %v792, %v791
      %v800 = vpack.c.b16 %v794, %v793
      %v801 = vpack.c.b16 %v796, %v795
      %v802 = vpack.c.b16 %v798, %v797
      %v806 = vunpack.c.l.b16 %v780
      %v807 = vunpack.c.l.b16 %v781
      %v808 = vunpack.c.l.b16 %v782
      %v809 = vpack.c.b16 %v807, %v806
      %v810 = vpack.c.b16 %v808, %v808
      %v813 = vsel %vm516, %v799, 0
      %v816 = vsel %vm516, %v800, 0
      %v819 = vsel %vm516, %v801, 0
      %v822 = vsel %vm516, %v802, 0
      %v825 = vsel %vm529, %v810, 0
      %827 = vmatpush.bf16.msra.mxu0 0
      %828 = vmatpush.bf16.msra.mxu0 0
      %829 = vmatpush.bf16.msra.mxu0 0
      %830 = vmatpush.bf16.msra.mxu0 0
      %831 = vmatpush.bf16.msra.mxu0 0
      %832 = vmatpush.bf16.msra.mxu0 0
      %833 = vmatpush.bf16.msra.mxu0 %v825
      %834 = vmatpush.bf16.msra.mxu0 %v809
      %835 = vmatmul.bf16.gmra.mxu0 %v813
      %v836 = vpop.f32.mrf.mxu0
      %v837 = vadd.f32 0.0, %v836
      %v838 = vpop.f32.mrf.mxu0
      %v839 = vadd.f32 0.0, %v838
      %840 = vmatmul.bf16.gmra.mxu0 %v816
      %v841 = vpop.f32.mrf.mxu0
      %v842 = vadd.f32 0.0, %v841
      %v843 = vpop.f32.mrf.mxu0
      %v844 = vadd.f32 0.0, %v843
      %845 = vmatmul.bf16.gmra.mxu0 %v819
      %v846 = vpop.f32.mrf.mxu0
      %v847 = vadd.f32 0.0, %v846
      %v848 = vpop.f32.mrf.mxu0
      %v849 = vadd.f32 0.0, %v848
      %850 = vmatmul.bf16.gmra.mxu0 %v822
      %v851 = vpop.f32.mrf.mxu0
      %v852 = vadd.f32 0.0, %v851
      %v853 = vpop.f32.mrf.mxu0
      %v854 = vadd.f32 0.0, %v853
      %855 = vdwg.mxu0
      %v856 = vadd.f32 %v771, %v837
      %v857 = vadd.f32 %v772, %v839
      %v858 = vadd.f32 %v773, %v842
      %v859 = vadd.f32 %v774, %v844
      %v860 = vadd.f32 %v775, %v847
      %v861 = vadd.f32 %v776, %v849
      %v862 = vadd.f32 %v777, %v852
      %v863 = vadd.f32 %v778, %v854
      %864 = vst.msk [vmem:[#allocation2] sm:$0xff] %vm434, %v856
      %865 = vst.msk [vmem:[#allocation2 + $0x8] sm:$0xff] %vm434, %v857
      %866 = vst.msk [vmem:[#allocation2 + $0x10] sm:$0xff] %vm434, %v858
      %867 = vst.msk [vmem:[#allocation2 + $0x18] sm:$0xff] %vm434, %v859
      %868 = vst.msk [vmem:[#allocation2 + $0x20] sm:$0xff] %vm434, %v860
      %869 = vst.msk [vmem:[#allocation2 + $0x28] sm:$0xff] %vm434, %v861
      %870 = vst.msk [vmem:[#allocation2 + $0x30] sm:$0xff] %vm434, %v862
      %871 = vst.msk [vmem:[#allocation2 + $0x38] sm:$0xff] %vm434, %v863
      %s872 = scalar_lea.vmem %s252, 16
      %v873 = vld [vmem:[%s872] sm:$0xf]
      %v874 = vld [vmem:[%s872 + $0x4] sm:$0x1]
      %v875 = vld [vmem:[%s872 + $0x8] sm:$0xf]
      %v876 = vld [vmem:[%s872 + $0xc] sm:$0x1]
      %v877 = vld [vmem:[%s872 + $0x10] sm:$0xf]
      %v878 = vld [vmem:[%s872 + $0x14] sm:$0x1]
      %v879 = vld [vmem:[%s872 + $0x18] sm:$0xf]
      %v880 = vld [vmem:[%s872 + $0x1c] sm:$0x1]
      %v881 = vld [vmem:[%s872 + $0x20] sm:$0xf]
      %v882 = vld [vmem:[%s872 + $0x24] sm:$0x1]
      %v883 = vld [vmem:[%s872 + $0x28] sm:$0xf]
      %v884 = vld [vmem:[%s872 + $0x2c] sm:$0x1]
      %v885 = vld [vmem:[%s872 + $0x30] sm:$0xf]
      %v886 = vld [vmem:[%s872 + $0x34] sm:$0x1]
      %v887 = vld [vmem:[%s872 + $0x38] sm:$0xf]
      %v888 = vld [vmem:[%s872 + $0x3c] sm:$0x1]
      %v905 = vunpack.c.l.b16 %v873
      %v906 = vunpack.c.l.b16 %v874
      %v907 = vunpack.c.l.b16 %v875
      %v908 = vunpack.c.l.b16 %v876
      %v909 = vunpack.c.l.b16 %v877
      %v910 = vunpack.c.l.b16 %v878
      %v911 = vunpack.c.l.b16 %v879
      %v912 = vunpack.c.l.b16 %v880
      %v913 = vunpack.c.l.b16 %v881
      %v914 = vunpack.c.l.b16 %v882
      %v915 = vunpack.c.l.b16 %v883
      %v916 = vunpack.c.l.b16 %v884
      %v917 = vunpack.c.l.b16 %v885
      %v918 = vunpack.c.l.b16 %v886
      %v919 = vunpack.c.l.b16 %v887
      %v920 = vunpack.c.l.b16 %v888
      %v921 = vpack.c.b16 %v906, %v905
      %v922 = vpack.c.b16 %v908, %v907
      %v923 = vpack.c.b16 %v910, %v909
      %v924 = vpack.c.b16 %v912, %v911
      %v925 = vpack.c.b16 %v914, %v913
      %v926 = vpack.c.b16 %v916, %v915
      %v927 = vpack.c.b16 %v918, %v917
      %v928 = vpack.c.b16 %v920, %v919
      %v930 = vshrl.u32 %v921, 16
      %v932 = vshll.u32 %v921, 16
      %v934 = vrot.slane %v932, 1
      %v935 = vor.u32 %v930, %v934
      %v937 = vshrl.u32 %v922, 16
      %v939 = vshll.u32 %v922, 16
      %v941 = vrot.slane %v939, 1
      %v942 = vor.u32 %v937, %v941
      %v944 = vshrl.u32 %v923, 16
      %v946 = vshll.u32 %v923, 16
      %v948 = vrot.slane %v946, 1
      %v949 = vor.u32 %v944, %v948
      %v951 = vshrl.u32 %v924, 16
      %v953 = vshll.u32 %v924, 16
      %v955 = vrot.slane %v953, 1
      %v956 = vor.u32 %v951, %v955
      %v958 = vshrl.u32 %v925, 16
      %v960 = vshll.u32 %v925, 16
      %v962 = vrot.slane %v960, 1
      %v963 = vor.u32 %v958, %v962
      %v965 = vshrl.u32 %v926, 16
      %v967 = vshll.u32 %v926, 16
      %v969 = vrot.slane %v967, 1
      %v970 = vor.u32 %v965, %v969
      %v972 = vshrl.u32 %v927, 16
      %v974 = vshll.u32 %v927, 16
      %v976 = vrot.slane %v974, 1
      %v977 = vor.u32 %v972, %v976
      %v979 = vshrl.u32 %v928, 16
      %v981 = vshll.u32 %v928, 16
      %v983 = vrot.slane %v981, 1
      %v984 = vor.u32 %v979, %v983
      %985 = vrot.lane.b32.xlu0 %v935, 8
      %v986 = vpop.permute.xlu0 %985
      %987 = vrot.lane.b32.xlu0 %v942, 8
      %v988 = vpop.permute.xlu0 %987
      %989 = vrot.lane.b32.xlu0 %v949, 8
      %v990 = vpop.permute.xlu0 %989
      %991 = vrot.lane.b32.xlu0 %v956, 8
      %v992 = vpop.permute.xlu0 %991
      %993 = vrot.lane.b32.xlu0 %v963, 8
      %v994 = vpop.permute.xlu0 %993
      %995 = vrot.lane.b32.xlu0 %v970, 8
      %v996 = vpop.permute.xlu0 %995
      %997 = vrot.lane.b32.xlu0 %v977, 8
      %v998 = vpop.permute.xlu0 %997
      %999 = vrot.lane.b32.xlu0 %v984, 8
      %v1000 = vpop.permute.xlu0 %999
      %v1001 = vrot.slane %v921, 1
      %v1002 = vrot.slane %v922, 1
      %v1003 = vrot.slane %v923, 1
      %v1004 = vrot.slane %v924, 1
      %v1005 = vrot.slane %v925, 1
      %v1006 = vrot.slane %v926, 1
      %v1007 = vrot.slane %v927, 1
      %v1008 = vrot.slane %v928, 1
      %1009 = vrot.lane.b32.xlu0 %v1001, 16
      %v1010 = vpop.permute.xlu0 %1009
      %1011 = vrot.lane.b32.xlu0 %v1002, 16
      %v1012 = vpop.permute.xlu0 %1011
      %1013 = vrot.lane.b32.xlu0 %v1003, 16
      %v1014 = vpop.permute.xlu0 %1013
      %1015 = vrot.lane.b32.xlu0 %v1004, 16
      %v1016 = vpop.permute.xlu0 %1015
      %1017 = vrot.lane.b32.xlu0 %v1005, 16
      %v1018 = vpop.permute.xlu0 %1017
      %1019 = vrot.lane.b32.xlu0 %v1006, 16
      %v1020 = vpop.permute.xlu0 %1019
      %1021 = vrot.lane.b32.xlu0 %v1007, 16
      %v1022 = vpop.permute.xlu0 %1021
      %1023 = vrot.lane.b32.xlu0 %v1008, 16
      %v1024 = vpop.permute.xlu0 %1023
      %v1027 = vsel %vm434, %v873, %v986
      %v1030 = vsel %vm434, %v875, %v988
      %v1033 = vsel %vm434, %v877, %v990
      %v1036 = vsel %vm434, %v879, %v992
      %v1039 = vsel %vm434, %v881, %v994
      %v1042 = vsel %vm434, %v883, %v996
      %v1045 = vsel %vm434, %v885, %v998
      %v1048 = vsel %vm434, %v887, %v1000
      %v1050 = vsel %vm459, %v1027, %v1010
      %v1052 = vsel %vm459, %v1030, %v1012
      %v1054 = vsel %vm459, %v1033, %v1014
      %v1056 = vsel %vm459, %v1036, %v1016
      %v1058 = vsel %vm459, %v1039, %v1018
      %v1060 = vsel %vm459, %v1042, %v1020
      %v1062 = vsel %vm459, %v1045, %v1022
      %v1064 = vsel %vm459, %v1048, %v1024
      %v1065 = vld [vmem:[#allocation2] sm:$0xff]
      %v1066 = vld [vmem:[#allocation2 + $0x8] sm:$0xff]
      %v1067 = vld [vmem:[#allocation2 + $0x10] sm:$0xff]
      %v1068 = vld [vmem:[#allocation2 + $0x18] sm:$0xff]
      %v1069 = vld [vmem:[#allocation2 + $0x20] sm:$0xff]
      %v1070 = vld [vmem:[#allocation2 + $0x28] sm:$0xff]
      %v1071 = vld [vmem:[#allocation2 + $0x30] sm:$0xff]
      %v1072 = vld [vmem:[#allocation2 + $0x38] sm:$0xff]
      %s1073 = scalar_lea.vmem %s258, 24
      %v1074 = vld [vmem:[%s1073] sm:$0xf]
      %v1075 = vld [vmem:[%s1073 + $0x4] sm:$0xf]
      %v1076 = vld [vmem:[%s1073 + $0x8] sm:$0xf]
      %v1085 = vunpack.c.l.b16 %v1050
      %v1086 = vunpack.c.l.b16 %v1052
      %v1087 = vunpack.c.l.b16 %v1054
      %v1088 = vunpack.c.l.b16 %v1056
      %v1089 = vunpack.c.l.b16 %v1058
      %v1090 = vunpack.c.l.b16 %v1060
      %v1091 = vunpack.c.l.b16 %v1062
      %v1092 = vunpack.c.l.b16 %v1064
      %v1093 = vpack.c.b16 %v1086, %v1085
      %v1094 = vpack.c.b16 %v1088, %v1087
      %v1095 = vpack.c.b16 %v1090, %v1089
      %v1096 = vpack.c.b16 %v1092, %v1091
      %v1100 = vunpack.c.l.b16 %v1074
      %v1101 = vunpack.c.l.b16 %v1075
      %v1102 = vunpack.c.l.b16 %v1076
      %v1103 = vpack.c.b16 %v1101, %v1100
      %v1104 = vpack.c.b16 %v1102, %v1102
      %v1107 = vsel %vm516, %v1093, 0
      %v1110 = vsel %vm516, %v1094, 0
      %v1113 = vsel %vm516, %v1095, 0
      %v1116 = vsel %vm516, %v1096, 0
      %v1119 = vsel %vm529, %v1104, 0
      %1121 = vmatpush.bf16.msra.mxu0 0
      %1122 = vmatpush.bf16.msra.mxu0 0
      %1123 = vmatpush.bf16.msra.mxu0 0
      %1124 = vmatpush.bf16.msra.mxu0 0
      %1125 = vmatpush.bf16.msra.mxu0 0
      %1126 = vmatpush.bf16.msra.mxu0 0
      %1127 = vmatpush.bf16.msra.mxu0 %v1119
      %1128 = vmatpush.bf16.msra.mxu0 %v1103
      %1129 = vmatmul.bf16.gmra.mxu0 %v1107
      %v1130 = vpop.f32.mrf.mxu0
      %v1131 = vadd.f32 0.0, %v1130
      %v1132 = vpop.f32.mrf.mxu0
      %v1133 = vadd.f32 0.0, %v1132
      %1134 = vmatmul.bf16.gmra.mxu0 %v1110
      %v1135 = vpop.f32.mrf.mxu0
      %v1136 = vadd.f32 0.0, %v1135
      %v1137 = vpop.f32.mrf.mxu0
      %v1138 = vadd.f32 0.0, %v1137
      %1139 = vmatmul.bf16.gmra.mxu0 %v1113
      %v1140 = vpop.f32.mrf.mxu0
      %v1141 = vadd.f32 0.0, %v1140
      %v1142 = vpop.f32.mrf.mxu0
      %v1143 = vadd.f32 0.0, %v1142
      %1144 = vmatmul.bf16.gmra.mxu0 %v1116
      %v1145 = vpop.f32.mrf.mxu0
      %v1146 = vadd.f32 0.0, %v1145
      %v1147 = vpop.f32.mrf.mxu0
      %v1148 = vadd.f32 0.0, %v1147
      %1149 = vdwg.mxu0
      %v1150 = vadd.f32 %v1065, %v1131
      %v1151 = vadd.f32 %v1066, %v1133
      %v1152 = vadd.f32 %v1067, %v1136
      %v1153 = vadd.f32 %v1068, %v1138
      %v1154 = vadd.f32 %v1069, %v1141
      %v1155 = vadd.f32 %v1070, %v1143
      %v1156 = vadd.f32 %v1071, %v1146
      %v1157 = vadd.f32 %v1072, %v1148
      %1158 = vst.msk [vmem:[#allocation2] sm:$0xff] %vm434, %v1150
      %1159 = vst.msk [vmem:[#allocation2 + $0x8] sm:$0xff] %vm434, %v1151
      %1160 = vst.msk [vmem:[#allocation2 + $0x10] sm:$0xff] %vm434, %v1152
      %1161 = vst.msk [vmem:[#allocation2 + $0x18] sm:$0xff] %vm434, %v1153
      %1162 = vst.msk [vmem:[#allocation2 + $0x20] sm:$0xff] %vm434, %v1154
      %1163 = vst.msk [vmem:[#allocation2 + $0x28] sm:$0xff] %vm434, %v1155
      %1164 = vst.msk [vmem:[#allocation2 + $0x30] sm:$0xff] %vm434, %v1156
      %1165 = vst.msk [vmem:[#allocation2 + $0x38] sm:$0xff] %vm434, %v1157
      %p1166 = scmp.eq.s32.totalorder %s22, 2
      // Predicated region
      $region41: #{basic_transformation_forward.3} parent=35 // pred_check
        %p1167 = pneg %p1166
      $region42: #{basic_transformation_forward.3} parent=35 // pred_check_branch
        %1169 = sbr.rel (%p1167) target = $region44
      $region43: #{basic_transformation_forward.3} parent=35 // pred_region
        %v1170 = vld [vmem:[#allocation2] sm:$0xff]
        %v1171 = vld [vmem:[#allocation2 + $0x8] sm:$0xff]
        %v1172 = vld [vmem:[#allocation2 + $0x10] sm:$0xff]
        %v1173 = vld [vmem:[#allocation2 + $0x18] sm:$0xff]
        %v1174 = vld [vmem:[#allocation2 + $0x20] sm:$0xff]
        %v1175 = vld [vmem:[#allocation2 + $0x28] sm:$0xff]
        %v1176 = vld [vmem:[#allocation2 + $0x30] sm:$0xff]
        %v1177 = vld [vmem:[#allocation2 + $0x38] sm:$0xff]
        %v1178 = vld [vmem:[%s2] sm:$0x1]
        %v1180 = vperm.slane %v1178, 0
        %v1182 = vmul.f32 %v1170, %v1180
        %v1183 = vmul.f32 %v1171, %v1180
        %v1184 = vmul.f32 %v1172, %v1180
        %v1185 = vmul.f32 %v1173, %v1180
        %v1186 = vmul.f32 %v1174, %v1180
        %v1187 = vmul.f32 %v1175, %v1180
        %v1188 = vmul.f32 %v1176, %v1180
        %v1189 = vmul.f32 %v1177, %v1180
        %v1190 = vld [vmem:[%s3] sm:$0x1]
        %v1192 = vperm.slane %v1190, 0
        %v1194 = vadd.f32 %v1182, %v1192
        %v1195 = vadd.f32 %v1183, %v1192
        %v1196 = vadd.f32 %v1184, %v1192
        %v1197 = vadd.f32 %v1185, %v1192
        %v1198 = vadd.f32 %v1186, %v1192
        %v1199 = vadd.f32 %v1187, %v1192
        %v1200 = vadd.f32 %v1188, %v1192
        %v1201 = vadd.f32 %v1189, %v1192
        %1202 = vst.msk [vmem:[%s267] sm:$0xff] %vm434, %v1194
        %1203 = vst.msk [vmem:[%s267 + $0x8] sm:$0xff] %vm434, %v1195
        %1204 = vst.msk [vmem:[%s267 + $0x10] sm:$0xff] %vm434, %v1196
        %1205 = vst.msk [vmem:[%s267 + $0x18] sm:$0xff] %vm434, %v1197
        %1206 = vst.msk [vmem:[%s267 + $0x20] sm:$0xff] %vm434, %v1198
        %1207 = vst.msk [vmem:[%s267 + $0x28] sm:$0xff] %vm434, %v1199
        %1208 = vst.msk [vmem:[%s267 + $0x30] sm:$0xff] %vm434, %v1200
        %1209 = vst.msk [vmem:[%s267 + $0x38] sm:$0xff] %vm434, %v1201
      $region44: #{basic_transformation_forward.3} parent=35 // pred_fallthru
        _
      %p1210 = scmp.lt.s32.totalorder %s20, 1
      %s1211 = scalar_select %p1210, %s20, 1
      %p1212 = scmp.lt.s32.totalorder %s21, 1
      %s1213 = scalar_select %p1212, %s21, 1
      %s1214 = smul.addr %s1213, 8
      %s1215 = smul.addr %s1211, 16
      %s1216 = sadd.s32 %s1214, %s1215
      %s1217 = smul.addr %s1216, 8
      %s1218 = scalar_lea.vmem %s4, %s1217
      // Predicated region
      $region45: #{basic_transformation_forward.3} parent=35 // pred_check
        %p1219 = pneg %p152
      $region46: #{basic_transformation_forward.3} parent=35 // pred_check_branch
        %1221 = sbr.rel (%p1219) target = $region48
      $region47: #{basic_transformation_forward.3} parent=35 // pred_region
        _
      $region48: #{basic_transformation_forward.3} parent=35 // pred_fallthru
        _
    $region36: #{basic_transformation_forward.3} parent=5 // pred_fallthru
      _
    %p1222 = scmp.le.s32.totalorder 2, %s10
    // Predicated region
    $region49: #{basic_transformation_forward.3} parent=5 // pred_check
      %p1223 = pneg %p1222
    $region50: #{basic_transformation_forward.3} parent=5 // pred_check_branch
      %1225 = sbr.rel (%p1223) target = $region52
    $region51: #{basic_transformation_forward.3} parent=5 // pred_region
      %s1226 = ssub.s32 %s10, 2
      // Predicated region
      $region53: #{basic_transformation_forward.3} parent=51 // pred_check
        %p1227 = pneg %p158
      $region54: #{basic_transformation_forward.3} parent=51 // pred_check_branch
        %1229 = sbr.rel (%p1227) target = $region56
      $region55: #{basic_transformation_forward.3} parent=51 // pred_region
        %p1230 = scmp.lt.s32.totalorder %s23, 1
        %s1231 = scalar_select %p1230, %s23, 1
        %p1232 = scmp.lt.s32.totalorder %s24, 1
        %s1233 = scalar_select %p1232, %s24, 1
        %s1234 = smul.addr %s1233, 8
        %s1235 = smul.addr %s1231, 16
        %s1236 = sadd.s32 %s1234, %s1235
        %s1237 = smul.addr %s1236, 8
        %s1238 = scalar_lea.vmem %s4, %s1237
      $region56: #{basic_transformation_forward.3} parent=51 // pred_fallthru
        _
    $region52: #{basic_transformation_forward.3} parent=5 // pred_fallthru
      _
  $region6: #{basic_transformation_forward.3} parent=0 // loop_footer
    %s14 = sadd.s32 1, %s10
  $region7: #{basic_transformation_forward.3} parent=0 // loop_footer_branch
    %9 = sbr.rel target = $region3
  $region8: #{basic_transformation_forward.3} parent=0 // loop_exit
    _

</llo_original>
